<compile_context>
chip_gen: v7x
topology: tpu7x:2x2x1
jax: 0.10.0
libtpu: 0.0.40
codegen_flags: <defaults>
</compile_context>

<pallas_src>
import functools

import jax
import jax.numpy as jnp
from jax.experimental import pallas as pl
from jax.experimental.pallas import tpu as pltpu


def _round_up(x, m):
    return ((x + m - 1) // m) * m


# ----------------------------- Pallas kernel -------------------------------
def _conv_bn_relu_kernel(x_ref, w_ref, scale_ref, shift_ref, o_ref, *, taps, p_out):
    # x_ref:     (1, Cin, Lp)        bf16 flattened, spatially padded input (1 image)
    # w_ref:     (KH*KW, TCO, Cin)   bf16 per-tap weight matrices
    # scale_ref: (TCO, 1)            f32  gamma / sqrt(running_var + eps)
    # shift_ref: (TCO, 1)            f32  beta - running_mean * scale
    # o_ref:     (1, TCO, P_pad)     f32  fused conv+BN+ReLU output (lane-dense)
    tco = o_ref.shape[1]
    acc = jnp.zeros((tco, p_out), jnp.float32)
    for t, d in enumerate(taps):                       # static, fully unrolled
        xs = x_ref[0, :, d:d + p_out]                  # (Cin, P_pad) bf16, contiguous
        acc = acc + jnp.dot(w_ref[t], xs, preferred_element_type=jnp.float32)
    y = acc * scale_ref[...] + shift_ref[...]          # fused BatchNorm (inference)
    o_ref[0] = jnp.maximum(y, 0.0).astype(o_ref.dtype) # fused ReLU


# ------------------------------ Wrapper ------------------------------------
def basic_conv2d(x_nchw, weight, gamma, beta, running_mean, running_var,
                 *, stride=1, padding=0, eps=1e-3, compute_dtype=jnp.bfloat16):
    """Forward of BasicConv2d. x_nchw: (N, Cin, H, W). weight: (Cout, Cin, KH, KW)."""
    N, Cin, H, W = x_nchw.shape
    Cout, _, KH, KW = weight.shape

    Hp, Wp = H + 2 * padding, W + 2 * padding
    Ho1, Wo1 = Hp - KH + 1, Wp - KW + 1          # dense (stride-1) output extents
    Ho = (H + 2 * padding - KH) // stride + 1
    Wo = (W + 2 * padding - KW) // stride + 1

    # Flattened-spatial direct conv: P dense positions (includes row-wrap garbage
    # columns wo in [Wo1, Wp), sliced off below). Pad P to a multiple of 128 so
    # the kernel's output stores are lane-dense and unmasked.
    P = Ho1 * Wp
    P_pad = _round_up(P, 128)
    d_max = (KH - 1) * Wp + (KW - 1)
    Lp = d_max + P_pad

    # --- glue: spatial pad + free flatten (input stays NCHW, no transpose) ---
    x = jnp.pad(x_nchw, ((0, 0), (0, 0), (padding, padding), (padding, padding)))
    x_flat = x.reshape(N, Cin, Hp * Wp)
    x_flat = jnp.pad(x_flat, ((0, 0), (0, 0), (0, Lp - Hp * Wp)))
    x_flat = x_flat.astype(compute_dtype)

    # per-tap weight matrices (KH*KW, Cout, Cin), tap order (kh, kw)
    w_taps = jnp.transpose(weight, (2, 3, 0, 1)).reshape(KH * KW, Cout, Cin)
    w_taps = w_taps.astype(compute_dtype)
    taps = tuple(kh * Wp + kw for kh in range(KH) for kw in range(KW))

    # fold BatchNorm (inference semantics, running stats) into scale/shift (f32)
    scale = (gamma.astype(jnp.float32)
             / jnp.sqrt(running_var.astype(jnp.float32) + eps)).reshape(Cout, 1)
    shift = (beta.astype(jnp.float32)
             - running_mean.astype(jnp.float32) * scale[:, 0]).reshape(Cout, 1)

    # Cout tiling keeps weight/output tiles bounded for production channel counts
    # (Cout up to 384) while staying well under v7x's 64 MiB VMEM.
    if Cout % 256 == 0:
        tco = 256
    elif Cout % 128 == 0:
        tco = 128
    else:
        tco = Cout
    n_co = Cout // tco

    kernel = functools.partial(_conv_bn_relu_kernel, taps=taps, p_out=P_pad)

    itemsize = jnp.dtype(compute_dtype).itemsize
    cost = pl.CostEstimate(
        flops=2 * N * Cout * Cin * KH * KW * P_pad,
        transcendentals=0,
        bytes_accessed=(x_flat.size * itemsize + w_taps.size * itemsize
                        + (scale.size + shift.size) * 4 + N * Cout * P_pad * 4),
    )

    out_flat = pl.pallas_call(
        kernel,
        out_shape=jax.ShapeDtypeStruct((N, Cout, P_pad), jnp.float32),
        grid_spec=pltpu.PrefetchScalarGridSpec(
            num_scalar_prefetch=0,
            grid=(N, n_co),
            in_specs=[
                pl.BlockSpec((1, Cin, Lp), lambda n, j: (n, 0, 0)),
                pl.BlockSpec((KH * KW, tco, Cin), lambda n, j: (0, j, 0)),
                pl.BlockSpec((tco, 1), lambda n, j: (j, 0)),
                pl.BlockSpec((tco, 1), lambda n, j: (j, 0)),
            ],
            out_specs=pl.BlockSpec((1, tco, P_pad), lambda n, j: (n, j, 0)),
        ),
        compiler_params=pltpu.CompilerParams(
            dimension_semantics=("parallel", "parallel"),
            vmem_limit_bytes=32 * 1024 * 1024,
        ),
        cost_estimate=cost,
    )(x_flat, w_taps, scale, shift)

    # NCHW result: free reshape + cheap slices (drop row-wrap / pad garbage).
    out = out_flat[:, :, :P].reshape(N, Cout, Ho1, Wp)[:, :, :, :Wo1]
    if stride > 1:
        # TODO(synk): stride > 1 computes the dense output and subsamples; a
        # dedicated strided kernel would avoid the extra compute.
        out = out[:, :, ::stride, ::stride]
    assert out.shape == (N, Cout, Ho, Wo)
    return out


# ------------------------------ Reference ----------------------------------
def _reference(x_nchw, weight, gamma, beta, running_mean, running_var,
               *, stride, padding, eps):
    y = jax.lax.conv_general_dilated(
        x_nchw.astype(jnp.float32), weight.astype(jnp.float32),
        window_strides=(stride, stride),
        padding=((padding, padding), (padding, padding)),
        dimension_numbers=("NCHW", "OIHW", "NCHW"))
    scale = gamma / jnp.sqrt(running_var + eps)
    shift = beta - running_mean * scale
    y = y * scale[None, :, None, None] + shift[None, :, None, None]
    return jnp.maximum(y, 0.0)


# --------------------------------- Main -------------------------------------
if __name__ == "__main__":
    key = jax.random.PRNGKey(0)
    k1, k2, k3, k4, k5, k6 = jax.random.split(key, 6)

    # small shapes consistent with the module: in_planes=4, out_planes=8,
    # kernel_size=3, stride=1, padding=1
    N, Cin, H, W = 2, 4, 16, 16
    Cout, KH, KW = 8, 3, 3
    stride, padding = 1, 1

    x = jax.random.normal(k1, (N, Cin, H, W), dtype=jnp.float32)
    weight = 0.1 * jax.random.normal(k2, (Cout, Cin, KH, KW), dtype=jnp.float32)
    gamma = 1.0 + 0.1 * jax.random.normal(k3, (Cout,), dtype=jnp.float32)
    beta = 0.1 * jax.random.normal(k4, (Cout,), dtype=jnp.float32)
    running_mean = 0.1 * jax.random.normal(k5, (Cout,), dtype=jnp.float32)
    running_var = jnp.abs(jax.random.normal(k6, (Cout,), dtype=jnp.float32)) + 0.5

    # TODO(synk): training-mode BatchNorm (batch statistics) not implemented;
    # this kernel uses inference semantics with running stats.
    fn = jax.jit(functools.partial(basic_conv2d, stride=stride,
                                   padding=padding, eps=1e-3))
    out = fn(x, weight, gamma, beta, running_mean, running_var)
    jax.block_until_ready(out)

    # Reference on the same bf16-rounded operands (the kernel feeds the MXU bf16
    # and accumulates in f32), so the comparison is apples-to-apples.
    x_r = x.astype(jnp.bfloat16).astype(jnp.float32)
    w_r = weight.astype(jnp.bfloat16).astype(jnp.float32)
    ref = _reference(x_r, w_r, gamma, beta, running_mean, running_var,
                     stride=stride, padding=padding, eps=1e-3)
    assert out.shape == ref.shape
    assert jnp.allclose(out, ref, atol=1e-3, rtol=1e-3), \
        f"max abs err {jnp.max(jnp.abs(out - ref))}"

    print("KERNEL_OK")
</pallas_src>

<mosaic_0001>
module attributes {stable_mosaic.version = 11 : i64} {
  func.func @_conv_bn_relu_kernel(%arg0: i32, %arg1: i32, %arg2: memref<1x4x422xbf16, #tpu.memory_space<vmem>>, %arg3: memref<9x8x4xbf16, #tpu.memory_space<vmem>>, %arg4: memref<8x1xf32, #tpu.memory_space<vmem>>, %arg5: memref<8x1xf32, #tpu.memory_space<vmem>>, %arg6: memref<1x8x384xf32, #tpu.memory_space<vmem>>) attributes {dimension_semantics = [#tpu.dimension_semantics<parallel>, #tpu.dimension_semantics<parallel>], iteration_bounds = array<i64: 2, 1>, scalar_prefetch = 0 : i64, scratch_operands = 0 : i64, tpu.core_type = #tpu.core_type<tc>, window_params = [{transform_indices = @transform_0, window_bounds = array<i64: 1, 4, 422>}, {transform_indices = @transform_1, window_bounds = array<i64: 9, 8, 4>}, {transform_indices = @transform_2, window_bounds = array<i64: 8, 1>}, {transform_indices = @transform_3, window_bounds = array<i64: 8, 1>}, {transform_indices = @transform_4, window_bounds = array<i64: 1, 8, 384>}]} {
    %cst = arith.constant 0.000000e+00 : f32
    %0 = vector.broadcast %cst : f32 to vector<8x384xf32>
    %c0 = arith.constant 0 : index
    %c0_0 = arith.constant 0 : index
    %c0_1 = arith.constant 0 : index
    %1 = vector.load %arg2[%c0, %c0_0, %c0_1] : memref<1x4x422xbf16, #tpu.memory_space<vmem>>, vector<1x4x384xbf16>
    %2 = vector.shape_cast %1 : vector<1x4x384xbf16> to vector<4x384xbf16>
    %c0_2 = arith.constant 0 : index
    %c0_3 = arith.constant 0 : index
    %c0_4 = arith.constant 0 : index
    %3 = vector.load %arg3[%c0_2, %c0_3, %c0_4] : memref<9x8x4xbf16, #tpu.memory_space<vmem>>, vector<1x8x4xbf16>
    %4 = vector.shape_cast %3 : vector<1x8x4xbf16> to vector<8x4xbf16>
    %cst_5 = arith.constant dense<0.000000e+00> : vector<8x384xf32>
    %5 = tpu.matmul %4, %2, %cst_5 {dimension_numbers = #tpu.dot_dimension_numbers<[1], [0], [0], [1], [0, 0, 1, 1], [], []>} : vector<8x4xbf16>, vector<4x384xbf16>, vector<8x384xf32> -> vector<8x384xf32>
    %6 = arith.addf %0, %5 : vector<8x384xf32>
    %c0_6 = arith.constant 0 : index
    %c0_7 = arith.constant 0 : index
    %c1 = arith.constant 1 : index
    %7 = vector.load %arg2[%c0_6, %c0_7, %c1] : memref<1x4x422xbf16, #tpu.memory_space<vmem>>, vector<1x4x384xbf16>
    %8 = vector.shape_cast %7 : vector<1x4x384xbf16> to vector<4x384xbf16>
    %c1_8 = arith.constant 1 : index
    %c0_9 = arith.constant 0 : index
    %c0_10 = arith.constant 0 : index
    %9 = vector.load %arg3[%c1_8, %c0_9, %c0_10] : memref<9x8x4xbf16, #tpu.memory_space<vmem>>, vector<1x8x4xbf16>
    %10 = vector.shape_cast %9 : vector<1x8x4xbf16> to vector<8x4xbf16>
    %cst_11 = arith.constant dense<0.000000e+00> : vector<8x384xf32>
    %11 = tpu.matmul %10, %8, %cst_11 {dimension_numbers = #tpu.dot_dimension_numbers<[1], [0], [0], [1], [0, 0, 1, 1], [], []>} : vector<8x4xbf16>, vector<4x384xbf16>, vector<8x384xf32> -> vector<8x384xf32>
    %12 = arith.addf %6, %11 : vector<8x384xf32>
    %c0_12 = arith.constant 0 : index
    %c0_13 = arith.constant 0 : index
    %c2 = arith.constant 2 : index
    %13 = vector.load %arg2[%c0_12, %c0_13, %c2] : memref<1x4x422xbf16, #tpu.memory_space<vmem>>, vector<1x4x384xbf16>
    %14 = vector.shape_cast %13 : vector<1x4x384xbf16> to vector<4x384xbf16>
    %c2_14 = arith.constant 2 : index
    %c0_15 = arith.constant 0 : index
    %c0_16 = arith.constant 0 : index
    %15 = vector.load %arg3[%c2_14, %c0_15, %c0_16] : memref<9x8x4xbf16, #tpu.memory_space<vmem>>, vector<1x8x4xbf16>
    %16 = vector.shape_cast %15 : vector<1x8x4xbf16> to vector<8x4xbf16>
    %cst_17 = arith.constant dense<0.000000e+00> : vector<8x384xf32>
    %17 = tpu.matmul %16, %14, %cst_17 {dimension_numbers = #tpu.dot_dimension_numbers<[1], [0], [0], [1], [0, 0, 1, 1], [], []>} : vector<8x4xbf16>, vector<4x384xbf16>, vector<8x384xf32> -> vector<8x384xf32>
    %18 = arith.addf %12, %17 : vector<8x384xf32>
    %c0_18 = arith.constant 0 : index
    %c0_19 = arith.constant 0 : index
    %c18 = arith.constant 18 : index
    %19 = vector.load %arg2[%c0_18, %c0_19, %c18] : memref<1x4x422xbf16, #tpu.memory_space<vmem>>, vector<1x4x384xbf16>
    %20 = vector.shape_cast %19 : vector<1x4x384xbf16> to vector<4x384xbf16>
    %c3 = arith.constant 3 : index
    %c0_20 = arith.constant 0 : index
    %c0_21 = arith.constant 0 : index
    %21 = vector.load %arg3[%c3, %c0_20, %c0_21] : memref<9x8x4xbf16, #tpu.memory_space<vmem>>, vector<1x8x4xbf16>
    %22 = vector.shape_cast %21 : vector<1x8x4xbf16> to vector<8x4xbf16>
    %cst_22 = arith.constant dense<0.000000e+00> : vector<8x384xf32>
    %23 = tpu.matmul %22, %20, %cst_22 {dimension_numbers = #tpu.dot_dimension_numbers<[1], [0], [0], [1], [0, 0, 1, 1], [], []>} : vector<8x4xbf16>, vector<4x384xbf16>, vector<8x384xf32> -> vector<8x384xf32>
    %24 = arith.addf %18, %23 : vector<8x384xf32>
    %c0_23 = arith.constant 0 : index
    %c0_24 = arith.constant 0 : index
    %c19 = arith.constant 19 : index
    %25 = vector.load %arg2[%c0_23, %c0_24, %c19] : memref<1x4x422xbf16, #tpu.memory_space<vmem>>, vector<1x4x384xbf16>
    %26 = vector.shape_cast %25 : vector<1x4x384xbf16> to vector<4x384xbf16>
    %c4 = arith.constant 4 : index
    %c0_25 = arith.constant 0 : index
    %c0_26 = arith.constant 0 : index
    %27 = vector.load %arg3[%c4, %c0_25, %c0_26] : memref<9x8x4xbf16, #tpu.memory_space<vmem>>, vector<1x8x4xbf16>
    %28 = vector.shape_cast %27 : vector<1x8x4xbf16> to vector<8x4xbf16>
    %cst_27 = arith.constant dense<0.000000e+00> : vector<8x384xf32>
    %29 = tpu.matmul %28, %26, %cst_27 {dimension_numbers = #tpu.dot_dimension_numbers<[1], [0], [0], [1], [0, 0, 1, 1], [], []>} : vector<8x4xbf16>, vector<4x384xbf16>, vector<8x384xf32> -> vector<8x384xf32>
    %30 = arith.addf %24, %29 : vector<8x384xf32>
    %c0_28 = arith.constant 0 : index
    %c0_29 = arith.constant 0 : index
    %c20 = arith.constant 20 : index
    %31 = vector.load %arg2[%c0_28, %c0_29, %c20] : memref<1x4x422xbf16, #tpu.memory_space<vmem>>, vector<1x4x384xbf16>
    %32 = vector.shape_cast %31 : vector<1x4x384xbf16> to vector<4x384xbf16>
    %c5 = arith.constant 5 : index
    %c0_30 = arith.constant 0 : index
    %c0_31 = arith.constant 0 : index
    %33 = vector.load %arg3[%c5, %c0_30, %c0_31] : memref<9x8x4xbf16, #tpu.memory_space<vmem>>, vector<1x8x4xbf16>
    %34 = vector.shape_cast %33 : vector<1x8x4xbf16> to vector<8x4xbf16>
    %cst_32 = arith.constant dense<0.000000e+00> : vector<8x384xf32>
    %35 = tpu.matmul %34, %32, %cst_32 {dimension_numbers = #tpu.dot_dimension_numbers<[1], [0], [0], [1], [0, 0, 1, 1], [], []>} : vector<8x4xbf16>, vector<4x384xbf16>, vector<8x384xf32> -> vector<8x384xf32>
    %36 = arith.addf %30, %35 : vector<8x384xf32>
    %c0_33 = arith.constant 0 : index
    %c0_34 = arith.constant 0 : index
    %c36 = arith.constant 36 : index
    %37 = vector.load %arg2[%c0_33, %c0_34, %c36] : memref<1x4x422xbf16, #tpu.memory_space<vmem>>, vector<1x4x384xbf16>
    %38 = vector.shape_cast %37 : vector<1x4x384xbf16> to vector<4x384xbf16>
    %c6 = arith.constant 6 : index
    %c0_35 = arith.constant 0 : index
    %c0_36 = arith.constant 0 : index
    %39 = vector.load %arg3[%c6, %c0_35, %c0_36] : memref<9x8x4xbf16, #tpu.memory_space<vmem>>, vector<1x8x4xbf16>
    %40 = vector.shape_cast %39 : vector<1x8x4xbf16> to vector<8x4xbf16>
    %cst_37 = arith.constant dense<0.000000e+00> : vector<8x384xf32>
    %41 = tpu.matmul %40, %38, %cst_37 {dimension_numbers = #tpu.dot_dimension_numbers<[1], [0], [0], [1], [0, 0, 1, 1], [], []>} : vector<8x4xbf16>, vector<4x384xbf16>, vector<8x384xf32> -> vector<8x384xf32>
    %42 = arith.addf %36, %41 : vector<8x384xf32>
    %c0_38 = arith.constant 0 : index
    %c0_39 = arith.constant 0 : index
    %c37 = arith.constant 37 : index
    %43 = vector.load %arg2[%c0_38, %c0_39, %c37] : memref<1x4x422xbf16, #tpu.memory_space<vmem>>, vector<1x4x384xbf16>
    %44 = vector.shape_cast %43 : vector<1x4x384xbf16> to vector<4x384xbf16>
    %c7 = arith.constant 7 : index
    %c0_40 = arith.constant 0 : index
    %c0_41 = arith.constant 0 : index
    %45 = vector.load %arg3[%c7, %c0_40, %c0_41] : memref<9x8x4xbf16, #tpu.memory_space<vmem>>, vector<1x8x4xbf16>
    %46 = vector.shape_cast %45 : vector<1x8x4xbf16> to vector<8x4xbf16>
    %cst_42 = arith.constant dense<0.000000e+00> : vector<8x384xf32>
    %47 = tpu.matmul %46, %44, %cst_42 {dimension_numbers = #tpu.dot_dimension_numbers<[1], [0], [0], [1], [0, 0, 1, 1], [], []>} : vector<8x4xbf16>, vector<4x384xbf16>, vector<8x384xf32> -> vector<8x384xf32>
    %48 = arith.addf %42, %47 : vector<8x384xf32>
    %c0_43 = arith.constant 0 : index
    %c0_44 = arith.constant 0 : index
    %c38 = arith.constant 38 : index
    %49 = vector.load %arg2[%c0_43, %c0_44, %c38] : memref<1x4x422xbf16, #tpu.memory_space<vmem>>, vector<1x4x384xbf16>
    %50 = vector.shape_cast %49 : vector<1x4x384xbf16> to vector<4x384xbf16>
    %c8 = arith.constant 8 : index
    %c0_45 = arith.constant 0 : index
    %c0_46 = arith.constant 0 : index
    %51 = vector.load %arg3[%c8, %c0_45, %c0_46] : memref<9x8x4xbf16, #tpu.memory_space<vmem>>, vector<1x8x4xbf16>
    %52 = vector.shape_cast %51 : vector<1x8x4xbf16> to vector<8x4xbf16>
    %cst_47 = arith.constant dense<0.000000e+00> : vector<8x384xf32>
    %53 = tpu.matmul %52, %50, %cst_47 {dimension_numbers = #tpu.dot_dimension_numbers<[1], [0], [0], [1], [0, 0, 1, 1], [], []>} : vector<8x4xbf16>, vector<4x384xbf16>, vector<8x384xf32> -> vector<8x384xf32>
    %54 = arith.addf %48, %53 : vector<8x384xf32>
    %c0_48 = arith.constant 0 : index
    %c0_49 = arith.constant 0 : index
    %55 = vector.load %arg4[%c0_48, %c0_49] : memref<8x1xf32, #tpu.memory_space<vmem>>, vector<8x1xf32>
    %56 = vector.broadcast %55 : vector<8x1xf32> to vector<8x384xf32>
    %57 = arith.mulf %54, %56 : vector<8x384xf32>
    %c0_50 = arith.constant 0 : index
    %c0_51 = arith.constant 0 : index
    %58 = vector.load %arg5[%c0_50, %c0_51] : memref<8x1xf32, #tpu.memory_space<vmem>>, vector<8x1xf32>
    %59 = vector.broadcast %58 : vector<8x1xf32> to vector<8x384xf32>
    %60 = arith.addf %57, %59 : vector<8x384xf32>
    %cst_52 = arith.constant 0.000000e+00 : f32
    %61 = vector.broadcast %cst_52 : f32 to vector<8x384xf32>
    %62 = arith.maximumf %60, %61 : vector<8x384xf32>
    %c0_53 = arith.constant 0 : index
    %c0_54 = arith.constant 0 : index
    %c0_55 = arith.constant 0 : index
    %63 = vector.load %arg6[%c0_53, %c0_54, %c0_55] : memref<1x8x384xf32, #tpu.memory_space<vmem>>, vector<1x8x384xf32>
    %64 = vector.shape_cast %63 : vector<1x8x384xf32> to vector<8x384xf32>
    %65 = vector.shape_cast %62 : vector<8x384xf32> to vector<1x8x384xf32>
    tpu.vector_store %arg6[%c0_53, %c0_54, %c0_55], %65 {strides = array<i32>} : memref<1x8x384xf32, #tpu.memory_space<vmem>>, vector<1x8x384xf32>,
    return
  }
  func.func @transform_0(%arg0: i32, %arg1: i32) -> (i32, i32, i32) {
    %c0_i32 = arith.constant 0 : i32
    %c0_i32_0 = arith.constant 0 : i32
    %c0_i32_1 = arith.constant 0 : i32
    return %arg0, %c0_i32, %c0_i32_0 : i32, i32, i32
  }
  func.func @transform_1(%arg0: i32, %arg1: i32) -> (i32, i32, i32) {
    %c0_i32 = arith.constant 0 : i32
    %c0_i32_0 = arith.constant 0 : i32
    %c0_i32_1 = arith.constant 0 : i32
    return %c0_i32, %arg1, %c0_i32_0 : i32, i32, i32
  }
  func.func @transform_2(%arg0: i32, %arg1: i32) -> (i32, i32) {
    %c0_i32 = arith.constant 0 : i32
    %c0_i32_0 = arith.constant 0 : i32
    return %arg1, %c0_i32 : i32, i32
  }
  func.func @transform_3(%arg0: i32, %arg1: i32) -> (i32, i32) {
    %c0_i32 = arith.constant 0 : i32
    %c0_i32_0 = arith.constant 0 : i32
    return %arg1, %c0_i32 : i32, i32
  }
  func.func @transform_4(%arg0: i32, %arg1: i32) -> (i32, i32, i32) {
    %c0_i32 = arith.constant 0 : i32
    %c0_i32_0 = arith.constant 0 : i32
    return %arg0, %arg1, %c0_i32 : i32, i32, i32
  }
}

</mosaic_0001>

<llo_original>
// kernel: basic_conv2d.1
$region0: #{basic_conv2d.1}
  #allocation0 [shape = 'u32[]', space=smem, size = 0x4, offset = 0x4, fixed_abs, tag = 'smem constant byte address 0x4 - core index']
  #allocation1 [shape = 'u32[144,128]{1,0:T(1,128)}', space=vmem, size = 0x12000, scoped, tag = 'internal scratch']
  %s0 = inlined_call_operand.vmem [shape: bf16[2,4,422], index: 0, kind: input, shape index: {}]
  %s1 = inlined_call_operand.vmem [shape: bf16[9,8,4], index: 1, kind: input, shape index: {}]
  %s2 = inlined_call_operand.vmem [shape: f32[8,1], index: 2, kind: input, shape index: {}]
  %s3 = inlined_call_operand.vmem [shape: f32[8,1], index: 3, kind: input, shape index: {}]
  %s4 = inlined_call_operand.vmem [shape: f32[2,8,384], index: 4, kind: output, shape index: {}]
  %s5 = sld [smem:[#allocation0]]
  $region49: #{basic_conv2d.1} parent=0
    _
  %s7 = ssub.s32 1, %s5
  %s8 = scalar_select 0, %s7, %s5
  loop: start=0, step=1, limit=4
  $region2: #{basic_conv2d.1} parent=0 // loop_pre_header
    _
  $region3: #{basic_conv2d.1} parent=0 // loop_header
    %s10 = sphi 0, %s14
    %p11 = scmp.ge.s32.totalorder %s10, 4
    %s17 = sphi 0, %s29
    %s18 = sphi 0, %s25
    %s19 = sphi 0, %s17
    %s20 = sphi 0, %s18
    %s21 = sphi 0, %s19
    %s22 = sphi 0, %s20
    %s32 = sphi 0, %s34
    %s35 = sphi 0, %s32
    %s36 = sphi 0, %s35
    %s52 = sphi 0, %s36
    %s58 = sphi 0, %s60
    %s61 = sphi 0, %s58
    %s62 = sphi 0, %s61
    %s78 = sphi 0, %s62
    %s84 = sphi 0, %s86
    %s87 = sphi 0, %s84
    %s88 = sphi 0, %s87
    %s104 = sphi 0, %s88
    %s110 = sphi 0, %s112
    %s113 = sphi 0, %s110
    %s114 = sphi 0, %s113
    %s130 = sphi 0, %s114
    %s138 = sphi 0, %s140
    %s141 = sphi 0, %s138
    %s142 = sphi 0, %s141
    %s158 = sphi 0, %s142
  $region4: #{basic_conv2d.1} parent=0 // loop_header_branch
    %13 = sbr.rel (%p11) target = $region8
  $region5: #{basic_conv2d.1} parent=0 // loop_body
    %s15 = ssub.s32 %s10, 1
    %s16 = ssub.s32 %s10, 2
    %s23 = sadd.s32 1, %s18
    %p24 = scmp.ge.s32.totalorder %s23, 1
    %s25 = scalar_select %p24, 0, %s23
    %s26 = sadd.s32 1, %s17
    %s27 = scalar_select %p24, %s26, %s17
    %p28 = scmp.ge.s32.totalorder %s27, 2
    %s29 = scalar_select %p28, 0, %s27
    %s30 = ssub.s32 %s17, %s29
    %p31 = scmp.eq.s32.totalorder %s30, 0
    %s33 = sadd.s32 %s32, 1
    %s34 = scalar_select %p31, %s32, %s33
    %p37 = pneg %p31
    %p38 = scmp.eq.s32.totalorder %s10, 1
    %p39 = por %p37, %p38
    %p40 = scmp.ne.s32.totalorder %s32, %s35
    %p41 = scmp.eq.s32.totalorder %s10, 0
    %p42 = por %p40, %p41
    %p43 = scmp.ne.s32.totalorder %s32, %s35
    %p44 = scmp.eq.s32.totalorder %s15, 1
    %p45 = por %p43, %p44
    %p46 = scmp.ne.s32.totalorder %s35, %s36
    %p47 = scmp.eq.s32.totalorder %s15, 0
    %p48 = por %p46, %p47
    %p49 = scmp.ne.s32.totalorder %s35, %s36
    %p50 = scmp.eq.s32.totalorder %s16, 1
    %p51 = por %p49, %p50
    %p53 = scmp.ne.s32.totalorder %s36, %s52
    %p54 = scmp.eq.s32.totalorder %s16, 0
    %p55 = por %p53, %p54
    %s56 = ssub.s32 %s18, %s25
    %p57 = scmp.eq.s32.totalorder %s56, 0
    %s59 = sadd.s32 %s58, 1
    %s60 = scalar_select %p57, %s58, %s59
    %p63 = pneg %p57
    %p64 = scmp.eq.s32.totalorder %s10, 1
    %p65 = por %p63, %p64
    %p66 = scmp.ne.s32.totalorder %s58, %s61
    %p67 = scmp.eq.s32.totalorder %s10, 0
    %p68 = por %p66, %p67
    %p69 = scmp.ne.s32.totalorder %s58, %s61
    %p70 = scmp.eq.s32.totalorder %s15, 1
    %p71 = por %p69, %p70
    %p72 = scmp.ne.s32.totalorder %s61, %s62
    %p73 = scmp.eq.s32.totalorder %s15, 0
    %p74 = por %p72, %p73
    %p75 = scmp.ne.s32.totalorder %s61, %s62
    %p76 = scmp.eq.s32.totalorder %s16, 1
    %p77 = por %p75, %p76
    %p79 = scmp.ne.s32.totalorder %s62, %s78
    %p80 = scmp.eq.s32.totalorder %s16, 0
    %p81 = por %p79, %p80
    %s82 = ssub.s32 %s18, %s25
    %p83 = scmp.eq.s32.totalorder %s82, 0
    %s85 = sadd.s32 %s84, 1
    %s86 = scalar_select %p83, %s84, %s85
    %p89 = pneg %p83
    %p90 = scmp.eq.s32.totalorder %s10, 1
    %p91 = por %p89, %p90
    %p92 = scmp.ne.s32.totalorder %s84, %s87
    %p93 = scmp.eq.s32.totalorder %s10, 0
    %p94 = por %p92, %p93
    %p95 = scmp.ne.s32.totalorder %s84, %s87
    %p96 = scmp.eq.s32.totalorder %s15, 1
    %p97 = por %p95, %p96
    %p98 = scmp.ne.s32.totalorder %s87, %s88
    %p99 = scmp.eq.s32.totalorder %s15, 0
    %p100 = por %p98, %p99
    %p101 = scmp.ne.s32.totalorder %s87, %s88
    %p102 = scmp.eq.s32.totalorder %s16, 1
    %p103 = por %p101, %p102
    %p105 = scmp.ne.s32.totalorder %s88, %s104
    %p106 = scmp.eq.s32.totalorder %s16, 0
    %p107 = por %p105, %p106
    %s108 = ssub.s32 %s18, %s25
    %p109 = scmp.eq.s32.totalorder %s108, 0
    %s111 = sadd.s32 %s110, 1
    %s112 = scalar_select %p109, %s110, %s111
    %p115 = pneg %p109
    %p116 = scmp.eq.s32.totalorder %s10, 1
    %p117 = por %p115, %p116
    %p118 = scmp.ne.s32.totalorder %s110, %s113
    %p119 = scmp.eq.s32.totalorder %s10, 0
    %p120 = por %p118, %p119
    %p121 = scmp.ne.s32.totalorder %s110, %s113
    %p122 = scmp.eq.s32.totalorder %s15, 1
    %p123 = por %p121, %p122
    %p124 = scmp.ne.s32.totalorder %s113, %s114
    %p125 = scmp.eq.s32.totalorder %s15, 0
    %p126 = por %p124, %p125
    %p127 = scmp.ne.s32.totalorder %s113, %s114
    %p128 = scmp.eq.s32.totalorder %s16, 1
    %p129 = por %p127, %p128
    %p131 = scmp.ne.s32.totalorder %s114, %s130
    %p132 = scmp.eq.s32.totalorder %s16, 0
    %p133 = por %p131, %p132
    %s134 = ssub.s32 %s17, %s29
    %s135 = ssub.s32 %s18, %s25
    %s136 = sor.u32 %s134, %s135
    %p137 = scmp.eq.s32.totalorder %s136, 0
    %s139 = sadd.s32 %s138, 1
    %s140 = scalar_select %p137, %s138, %s139
    %p143 = pneg %p137
    %p144 = scmp.eq.s32.totalorder %s10, 1
    %p145 = por %p143, %p144
    %p146 = scmp.ne.s32.totalorder %s138, %s141
    %p147 = scmp.eq.s32.totalorder %s10, 0
    %p148 = por %p146, %p147
    %p149 = scmp.ne.s32.totalorder %s138, %s141
    %p150 = scmp.eq.s32.totalorder %s15, 1
    %p151 = por %p149, %p150
    %p152 = scmp.ne.s32.totalorder %s141, %s142
    %p153 = scmp.eq.s32.totalorder %s15, 0
    %p154 = por %p152, %p153
    %p155 = scmp.ne.s32.totalorder %s141, %s142
    %p156 = scmp.eq.s32.totalorder %s16, 1
    %p157 = por %p155, %p156
    %p159 = scmp.ne.s32.totalorder %s142, %s158
    %p160 = scmp.eq.s32.totalorder %s16, 0
    %p161 = por %p159, %p160
    %p162 = scmp.le.s32.totalorder 1, %s10
    %p163 = scmp.lt.s32.totalorder %s10, 3
    %p164 = pnand %p162, %p163
    %p165 = pneg %p164
    // Predicated region
    $region9: #{basic_conv2d.1} parent=5 // pred_check
      _
    $region10: #{basic_conv2d.1} parent=5 // pred_check_branch
      %167 = sbr.rel (%p164) target = $region12
    $region11: #{basic_conv2d.1} parent=5 // pred_region
      %s168 = ssub.s32 %s10, 1
      // Predicated region
      $region13: #{basic_conv2d.1} parent=11 // pred_check
        %p169 = pneg %p74
      $region14: #{basic_conv2d.1} parent=11 // pred_check_branch
        %171 = sbr.rel (%p169) target = $region16
      $region15: #{basic_conv2d.1} parent=11 // pred_region
        %p172 = scmp.lt.s32.totalorder %s20, 0
        %s173 = scalar_select %p172, %s20, 0
        %s174 = smul.addr %s173, 4
        %s175 = scalar_lea.vmem %s1, %s174
      $region16: #{basic_conv2d.1} parent=11 // pred_fallthru
        _
      // Predicated region
      $region17: #{basic_conv2d.1} parent=11 // pred_check
        %p176 = pneg %p100
      $region18: #{basic_conv2d.1} parent=11 // pred_check_branch
        %178 = sbr.rel (%p176) target = $region20
      $region19: #{basic_conv2d.1} parent=11 // pred_region
        %p179 = scmp.lt.s32.totalorder %s20, 0
        %s180 = scalar_select %p179, %s20, 0
        %s181 = smul.addr %s180, 8
        %s182 = scalar_lea.vmem %s2, %s181
      $region20: #{basic_conv2d.1} parent=11 // pred_fallthru
        _
      // Predicated region
      $region21: #{basic_conv2d.1} parent=11 // pred_check
        %p183 = pneg %p126
      $region22: #{basic_conv2d.1} parent=11 // pred_check_branch
        %185 = sbr.rel (%p183) target = $region24
      $region23: #{basic_conv2d.1} parent=11 // pred_region
        %p186 = scmp.lt.s32.totalorder %s20, 0
        %s187 = scalar_select %p186, %s20, 0
        %s188 = smul.addr %s187, 8
        %s189 = scalar_lea.vmem %s3, %s188
      $region24: #{basic_conv2d.1} parent=11 // pred_fallthru
        _
    $region12: #{basic_conv2d.1} parent=5 // pred_fallthru
      _
    %p190 = scmp.lt.s32.totalorder %s10, 2
    // Predicated region
    $region25: #{basic_conv2d.1} parent=5 // pred_check
      %p191 = pneg %p190
    $region26: #{basic_conv2d.1} parent=5 // pred_check_branch
      %193 = sbr.rel (%p191) target = $region28
    $region27: #{basic_conv2d.1} parent=5 // pred_region
      // Predicated region
      $region29: #{basic_conv2d.1} parent=27 // pred_check
        %p194 = pneg %p42
      $region30: #{basic_conv2d.1} parent=27 // pred_check_branch
        %196 = sbr.rel (%p194) target = $region32
      $region31: #{basic_conv2d.1} parent=27 // pred_region
        %p197 = scmp.lt.s32.totalorder %s17, 1
        %s198 = scalar_select %p197, %s17, 1
        %s199 = smul.addr %s198, 4
        %s200 = smul.addr %s199, 2
        %s201 = scalar_lea.vmem %s0, %s200
      $region32: #{basic_conv2d.1} parent=27 // pred_fallthru
        _
    $region28: #{basic_conv2d.1} parent=5 // pred_fallthru
      _
    %p202 = scmp.le.s32.totalorder 1, %s10
    %p203 = scmp.lt.s32.totalorder %s10, 3
    %p204 = pnand %p202, %p203
    %p205 = pneg %p204
    // Predicated region
    $region33: #{basic_conv2d.1} parent=5 // pred_check
      _
    $region34: #{basic_conv2d.1} parent=5 // pred_check_branch
      %207 = sbr.rel (%p204) target = $region36
    $region35: #{basic_conv2d.1} parent=5 // pred_region
      %s208 = ssub.s32 %s10, 1
      %p209 = scmp.lt.s32.totalorder %s19, 1
      %s210 = scalar_select %p209, %s19, 1
      %s211 = smul.addr %s210, 4
      %s212 = smul.addr %s211, 2
      %s213 = scalar_lea.vmem %s0, %s212
      %p214 = pneg %p48
      %p215 = pneg %p45
      %p216 = scmp.lt.s32.totalorder %s20, 0
      %s217 = scalar_select %p216, %s20, 0
      %s218 = smul.addr %s217, 4
      %s219 = scalar_lea.vmem %s1, %s218
      %p220 = pneg %p74
      %p221 = pneg %p71
      %p222 = scmp.lt.s32.totalorder %s20, 0
      %s223 = scalar_select %p222, %s20, 0
      %s224 = smul.addr %s223, 8
      %s225 = scalar_lea.vmem %s2, %s224
      %p226 = pneg %p100
      %p227 = pneg %p97
      %p228 = scmp.lt.s32.totalorder %s20, 0
      %s229 = scalar_select %p228, %s20, 0
      %s230 = smul.addr %s229, 8
      %s231 = scalar_lea.vmem %s3, %s230
      %p232 = pneg %p126
      %p233 = pneg %p123
      %p234 = pneg %p154
      %p235 = pneg %p151
      %p236 = scmp.lt.s32.totalorder %s19, 1
      %s237 = scalar_select %p236, %s19, 1
      %p238 = scmp.lt.s32.totalorder %s20, 0
      %s239 = scalar_select %p238, %s20, 0
      %s240 = smul.addr %s239, 3
      %s241 = smul.addr %s237, 3
      %s242 = sadd.s32 %s240, %s241
      %s243 = smul.addr %s242, 8
      %s244 = scalar_lea.vmem %s4, %s243
      %p245 = scmp.lt.s32.totalorder %s19, 1
      %s246 = scalar_select %p245, %s19, 1
      %s247 = smul.addr %s246, 4
      %s248 = smul.addr %s247, 2
      %s249 = scalar_lea.vmem %s0, %s248
      %p250 = scmp.lt.s32.totalorder %s20, 0
      %s251 = scalar_select %p250, %s20, 0
      %s252 = smul.addr %s251, 4
      %s253 = scalar_lea.vmem %s1, %s252
      %p254 = scmp.lt.s32.totalorder %s20, 0
      %s255 = scalar_select %p254, %s20, 0
      %s256 = smul.addr %s255, 8
      %s257 = scalar_lea.vmem %s2, %s256
      %p258 = scmp.lt.s32.totalorder %s20, 0
      %s259 = scalar_select %p258, %s20, 0
      %s260 = smul.addr %s259, 8
      %s261 = scalar_lea.vmem %s3, %s260
      %p262 = scmp.lt.s32.totalorder %s19, 1
      %s263 = scalar_select %p262, %s19, 1
      %p264 = scmp.lt.s32.totalorder %s20, 0
      %s265 = scalar_select %p264, %s20, 0
      %s266 = smul.addr %s265, 3
      %s267 = smul.addr %s263, 3
      %s268 = sadd.s32 %s266, %s267
      %s269 = smul.addr %s268, 8
      %s270 = scalar_lea.vmem %s4, %s269
      %v272 = vld [vmem:[%s249] sm:$0x3f]
      %v273 = vld [vmem:[%s253] sm:$0xf]
      %v274 = vld [vmem:[%s249] sm:$0xff]
      %s275 = scalar_lea.vmem %s253, 4
      %v276 = vld [vmem:[%s275] sm:$0xf]
      %v278 = vcombine.high %v274, %v274
      %v280 = vunpack.c.l.s4 1983009808
      %v281 = vunpack.c.0.s8 %v280
      %v282 = vlaneseq
      %v283 = vshrl.u32 %v282, 7
      %v284 = vsub.s32 %v281, %v283
      %v285 = vrot.slane %v274, %v284
      %v287 = vunpack.c.l.s4 1983009808
      %v288 = vunpack.c.0.s8 %v287
      %v289 = vlaneseq
      %v290 = vshrl.u32 %v289, 7
      %v291 = vsub.s32 %v288, %v290
      %v292 = vrot.slane %v278, %v291
      %v293 = vcombine.high %v285, %v285
      %v294 = vcombine.high %v292, %v292
      %295 = vrot.lane.b32.xlu0 %v285, 127
      %v296 = vpop.permute.xlu0 %295
      %297 = vrot.lane.b32.xlu0 %v293, 127
      %v298 = vpop.permute.xlu0 %297
      %299 = vrot.lane.b32.xlu0 %v292, 127
      %v300 = vpop.permute.xlu0 %299
      %301 = vrot.lane.b32.xlu0 %v294, 127
      %v302 = vpop.permute.xlu0 %301
      %vm303 = vcmask 1039360
      %v304 = vsel %vm303, %v296, %v298
      %v305 = vsel %vm303, %v298, %v300
      %v306 = vsel %vm303, %v300, %v302
      %vm307 = vcmask 31744
      %v309 = vsel %vm307, %v276, 0
      %vm311 = vcmask 1041408
      %v313 = vsel %vm311, %v304, 0
      %v316 = vsel %vm311, %v305, 0
      %v319 = vsel %vm311, %v306, 0
      %321 = vmatprep.subr.bf16.mxu0 %v316
      %322 = vmatpush1.bf16.msra.mxu0 %v313
      %323 = vmatprep.subr.bf16.mxu0 0
      %324 = vmatpush1.bf16.msra.mxu0 0
      %325 = vmatprep.subr.bf16.mxu0 0
      %326 = vmatpush1.bf16.msra.mxu0 0
      %327 = vmatprep.subr.bf16.mxu0 0
      %328 = vmatpush1.bf16.msra.mxu0 0
      %329 = vmatprep.subr.bf16.mxu0 0
      %330 = vmatpush1.bf16.msra.mxu0 0
      %331 = vmatprep.subr.bf16.mxu0 0
      %332 = vmatpush1.bf16.msra.mxu0 0
      %333 = vmatprep.subr.bf16.mxu0 0
      %334 = vmatpush1.bf16.msra.mxu0 0
      %335 = vmatprep.subr.bf16.mxu0 0
      %336 = vmatpush1.bf16.msra.mxu0 0
      %337 = vmatprep.subr.bf16.mxu0 0
      %338 = vmatpush1.bf16.msra.mxu0 0
      %339 = vmatprep.subr.bf16.mxu0 0
      %340 = vmatpush1.bf16.msra.mxu0 0
      %341 = vmatprep.subr.bf16.mxu0 0
      %342 = vmatpush1.bf16.msra.mxu0 0
      %343 = vmatprep.subr.bf16.mxu0 0
      %344 = vmatpush1.bf16.msra.mxu0 0
      %345 = vmatprep.subr.bf16.mxu0 0
      %346 = vmatpush1.bf16.msra.mxu0 0
      %347 = vmatprep.subr.bf16.mxu0 0
      %348 = vmatpush1.bf16.msra.mxu0 0
      %349 = vmatprep.subr.bf16.mxu0 0
      %350 = vmatpush1.bf16.msra.mxu0 0
      %351 = vmatprep.subr.bf16.mxu0 0
      %352 = vmatpush1.bf16.msra.mxu0 0
      %353 = vmatprep.mubr.bf16.mxu0 0
      %354 = vmatmul.mubr.bf16.gmra.mrb[0].mxu0 %v309
      %v355 = vpop.f32.mrb[0].mxu0
      %v356 = vadd.f32 0.0, %v355
      %v357 = vpop.f32.mrb[0].mxu0
      %v358 = vadd.f32 0.0, %v357
      %v359 = vpop.f32.mrb[0].mxu0
      %v360 = vpop.f32.mrb[0].mxu0
      %361 = vdwg.mxu0
      %362 = vmatprep.subr.bf16.mxu0 0
      %363 = vmatpush1.bf16.msra.mxu0 %v319
      %364 = vmatprep.subr.bf16.mxu0 0
      %365 = vmatpush1.bf16.msra.mxu0 0
      %366 = vmatprep.subr.bf16.mxu0 0
      %367 = vmatpush1.bf16.msra.mxu0 0
      %368 = vmatprep.subr.bf16.mxu0 0
      %369 = vmatpush1.bf16.msra.mxu0 0
      %370 = vmatprep.subr.bf16.mxu0 0
      %371 = vmatpush1.bf16.msra.mxu0 0
      %372 = vmatprep.subr.bf16.mxu0 0
      %373 = vmatpush1.bf16.msra.mxu0 0
      %374 = vmatprep.subr.bf16.mxu0 0
      %375 = vmatpush1.bf16.msra.mxu0 0
      %376 = vmatprep.subr.bf16.mxu0 0
      %377 = vmatpush1.bf16.msra.mxu0 0
      %378 = vmatprep.subr.bf16.mxu0 0
      %379 = vmatpush1.bf16.msra.mxu0 0
      %380 = vmatprep.subr.bf16.mxu0 0
      %381 = vmatpush1.bf16.msra.mxu0 0
      %382 = vmatprep.subr.bf16.mxu0 0
      %383 = vmatpush1.bf16.msra.mxu0 0
      %384 = vmatprep.subr.bf16.mxu0 0
      %385 = vmatpush1.bf16.msra.mxu0 0
      %386 = vmatprep.subr.bf16.mxu0 0
      %387 = vmatpush1.bf16.msra.mxu0 0
      %388 = vmatprep.subr.bf16.mxu0 0
      %389 = vmatpush1.bf16.msra.mxu0 0
      %390 = vmatprep.subr.bf16.mxu0 0
      %391 = vmatpush1.bf16.msra.mxu0 0
      %392 = vmatprep.subr.bf16.mxu0 0
      %393 = vmatpush1.bf16.msra.mxu0 0
      %394 = vmatprep.mubr.bf16.mxu0 0
      %395 = vmatmul.mubr.bf16.gmra.mrb[0].mxu0 %v309
      %v396 = vpop.f32.mrb[0].mxu0
      %v397 = vadd.f32 0.0, %v396
      %v398 = vpop.f32.mrb[0].mxu0
      %v399 = vpop.f32.mrb[0].mxu0
      %v400 = vpop.f32.mrb[0].mxu0
      %401 = vdwg.mxu0
      %v403 = vcombine.high %v272, %v272
      %v405 = vunpack.c.l.s4 1983009808
      %v406 = vunpack.c.0.s8 %v405
      %v407 = vlaneseq
      %v408 = vshrl.u32 %v407, 7
      %v409 = vsub.s32 %v406, %v408
      %v410 = vrot.slane %v272, %v409
      %v412 = vunpack.c.l.s4 1983009808
      %v413 = vunpack.c.0.s8 %v412
      %v414 = vlaneseq
      %v415 = vshrl.u32 %v414, 7
      %v416 = vsub.s32 %v413, %v415
      %v417 = vrot.slane %v403, %v416
      %v418 = vcombine.high %v410, %v410
      %v420 = vsel %vm307, %v273, 0
      %v423 = vsel %vm311, %v410, 0
      %v426 = vsel %vm311, %v418, 0
      %v429 = vsel %vm311, %v417, 0
      %431 = vmatprep.subr.bf16.mxu0 %v426
      %432 = vmatpush1.bf16.msra.mxu0 %v423
      %433 = vmatprep.subr.bf16.mxu0 0
      %434 = vmatpush1.bf16.msra.mxu0 0
      %435 = vmatprep.subr.bf16.mxu0 0
      %436 = vmatpush1.bf16.msra.mxu0 0
      %437 = vmatprep.subr.bf16.mxu0 0
      %438 = vmatpush1.bf16.msra.mxu0 0
      %439 = vmatprep.subr.bf16.mxu0 0
      %440 = vmatpush1.bf16.msra.mxu0 0
      %441 = vmatprep.subr.bf16.mxu0 0
      %442 = vmatpush1.bf16.msra.mxu0 0
      %443 = vmatprep.subr.bf16.mxu0 0
      %444 = vmatpush1.bf16.msra.mxu0 0
      %445 = vmatprep.subr.bf16.mxu0 0
      %446 = vmatpush1.bf16.msra.mxu0 0
      %447 = vmatprep.subr.bf16.mxu0 0
      %448 = vmatpush1.bf16.msra.mxu0 0
      %449 = vmatprep.subr.bf16.mxu0 0
      %450 = vmatpush1.bf16.msra.mxu0 0
      %451 = vmatprep.subr.bf16.mxu0 0
      %452 = vmatpush1.bf16.msra.mxu0 0
      %453 = vmatprep.subr.bf16.mxu0 0
      %454 = vmatpush1.bf16.msra.mxu0 0
      %455 = vmatprep.subr.bf16.mxu0 0
      %456 = vmatpush1.bf16.msra.mxu0 0
      %457 = vmatprep.subr.bf16.mxu0 0
      %458 = vmatpush1.bf16.msra.mxu0 0
      %459 = vmatprep.subr.bf16.mxu0 0
      %460 = vmatpush1.bf16.msra.mxu0 0
      %461 = vmatprep.subr.bf16.mxu0 0
      %462 = vmatpush1.bf16.msra.mxu0 0
      %463 = vmatprep.mubr.bf16.mxu0 0
      %464 = vmatmul.mubr.bf16.gmra.mrb[0].mxu0 %v420
      %v465 = vpop.f32.mrb[0].mxu0
      %v466 = vadd.f32 %v356, %v465
      %v467 = vpop.f32.mrb[0].mxu0
      %v468 = vadd.f32 %v358, %v467
      %v469 = vpop.f32.mrb[0].mxu0
      %v470 = vpop.f32.mrb[0].mxu0
      %471 = vdwg.mxu0
      %472 = vmatprep.subr.bf16.mxu0 0
      %473 = vmatpush1.bf16.msra.mxu0 %v429
      %474 = vmatprep.subr.bf16.mxu0 0
      %475 = vmatpush1.bf16.msra.mxu0 0
      %476 = vmatprep.subr.bf16.mxu0 0
      %477 = vmatpush1.bf16.msra.mxu0 0
      %478 = vmatprep.subr.bf16.mxu0 0
      %479 = vmatpush1.bf16.msra.mxu0 0
      %480 = vmatprep.subr.bf16.mxu0 0
      %481 = vmatpush1.bf16.msra.mxu0 0
      %482 = vmatprep.subr.bf16.mxu0 0
      %483 = vmatpush1.bf16.msra.mxu0 0
      %484 = vmatprep.subr.bf16.mxu0 0
      %485 = vmatpush1.bf16.msra.mxu0 0
      %486 = vmatprep.subr.bf16.mxu0 0
      %487 = vmatpush1.bf16.msra.mxu0 0
      %488 = vmatprep.subr.bf16.mxu0 0
      %489 = vmatpush1.bf16.msra.mxu0 0
      %490 = vmatprep.subr.bf16.mxu0 0
      %491 = vmatpush1.bf16.msra.mxu0 0
      %492 = vmatprep.subr.bf16.mxu0 0
      %493 = vmatpush1.bf16.msra.mxu0 0
      %494 = vmatprep.subr.bf16.mxu0 0
      %495 = vmatpush1.bf16.msra.mxu0 0
      %496 = vmatprep.subr.bf16.mxu0 0
      %497 = vmatpush1.bf16.msra.mxu0 0
      %498 = vmatprep.subr.bf16.mxu0 0
      %499 = vmatpush1.bf16.msra.mxu0 0
      %500 = vmatprep.subr.bf16.mxu0 0
      %501 = vmatpush1.bf16.msra.mxu0 0
      %502 = vmatprep.subr.bf16.mxu0 0
      %503 = vmatpush1.bf16.msra.mxu0 0
      %504 = vmatprep.mubr.bf16.mxu0 0
      %505 = vmatmul.mubr.bf16.gmra.mrb[0].mxu0 %v420
      %v506 = vpop.f32.mrb[0].mxu0
      %v507 = vadd.f32 %v397, %v506
      %v508 = vpop.f32.mrb[0].mxu0
      %v509 = vpop.f32.mrb[0].mxu0
      %v510 = vpop.f32.mrb[0].mxu0
      %511 = vdwg.mxu0
      %v512 = vld [vmem:[%s249] sm:$0xff]
      %s513 = scalar_lea.vmem %s253, 8
      %v514 = vld [vmem:[%s513] sm:$0xf]
      %v516 = vcombine.high %v512, %v512
      %v518 = vunpack.c.l.s4 1983009808
      %v519 = vunpack.c.0.s8 %v518
      %v520 = vlaneseq
      %v521 = vshrl.u32 %v520, 7
      %v522 = vsub.s32 %v519, %v521
      %v523 = vrot.slane %v512, %v522
      %v525 = vunpack.c.l.s4 1983009808
      %v526 = vunpack.c.0.s8 %v525
      %v527 = vlaneseq
      %v528 = vshrl.u32 %v527, 7
      %v529 = vsub.s32 %v526, %v528
      %v530 = vrot.slane %v516, %v529
      %v531 = vcombine.high %v523, %v523
      %v532 = vcombine.high %v530, %v530
      %533 = vrot.lane.b32.xlu0 %v523, 126
      %v534 = vpop.permute.xlu0 %533
      %535 = vrot.lane.b32.xlu0 %v531, 126
      %v536 = vpop.permute.xlu0 %535
      %537 = vrot.lane.b32.xlu0 %v530, 126
      %v538 = vpop.permute.xlu0 %537
      %539 = vrot.lane.b32.xlu0 %v532, 126
      %v540 = vpop.permute.xlu0 %539
      %vm541 = vcmask 1031168
      %v542 = vsel %vm541, %v534, %v536
      %v543 = vsel %vm541, %v536, %v538
      %v544 = vsel %vm541, %v538, %v540
      %v546 = vsel %vm307, %v514, 0
      %v549 = vsel %vm311, %v542, 0
      %v552 = vsel %vm311, %v543, 0
      %v555 = vsel %vm311, %v544, 0
      %557 = vmatprep.subr.bf16.mxu0 %v552
      %558 = vmatpush1.bf16.msra.mxu0 %v549
      %559 = vmatprep.subr.bf16.mxu0 0
      %560 = vmatpush1.bf16.msra.mxu0 0
      %561 = vmatprep.subr.bf16.mxu0 0
      %562 = vmatpush1.bf16.msra.mxu0 0
      %563 = vmatprep.subr.bf16.mxu0 0
      %564 = vmatpush1.bf16.msra.mxu0 0
      %565 = vmatprep.subr.bf16.mxu0 0
      %566 = vmatpush1.bf16.msra.mxu0 0
      %567 = vmatprep.subr.bf16.mxu0 0
      %568 = vmatpush1.bf16.msra.mxu0 0
      %569 = vmatprep.subr.bf16.mxu0 0
      %570 = vmatpush1.bf16.msra.mxu0 0
      %571 = vmatprep.subr.bf16.mxu0 0
      %572 = vmatpush1.bf16.msra.mxu0 0
      %573 = vmatprep.subr.bf16.mxu0 0
      %574 = vmatpush1.bf16.msra.mxu0 0
      %575 = vmatprep.subr.bf16.mxu0 0
      %576 = vmatpush1.bf16.msra.mxu0 0
      %577 = vmatprep.subr.bf16.mxu0 0
      %578 = vmatpush1.bf16.msra.mxu0 0
      %579 = vmatprep.subr.bf16.mxu0 0
      %580 = vmatpush1.bf16.msra.mxu0 0
      %581 = vmatprep.subr.bf16.mxu0 0
      %582 = vmatpush1.bf16.msra.mxu0 0
      %583 = vmatprep.subr.bf16.mxu0 0
      %584 = vmatpush1.bf16.msra.mxu0 0
      %585 = vmatprep.subr.bf16.mxu0 0
      %586 = vmatpush1.bf16.msra.mxu0 0
      %587 = vmatprep.subr.bf16.mxu0 0
      %588 = vmatpush1.bf16.msra.mxu0 0
      %589 = vmatprep.mubr.bf16.mxu0 0
      %590 = vmatmul.mubr.bf16.gmra.mrb[0].mxu0 %v546
      %v591 = vpop.f32.mrb[0].mxu0
      %v592 = vadd.f32 0.0, %v591
      %v593 = vpop.f32.mrb[0].mxu0
      %v594 = vadd.f32 0.0, %v593
      %v595 = vpop.f32.mrb[0].mxu0
      %v596 = vpop.f32.mrb[0].mxu0
      %597 = vdwg.mxu0
      %598 = vmatprep.subr.bf16.mxu0 0
      %599 = vmatpush1.bf16.msra.mxu0 %v555
      %600 = vmatprep.subr.bf16.mxu0 0
      %601 = vmatpush1.bf16.msra.mxu0 0
      %602 = vmatprep.subr.bf16.mxu0 0
      %603 = vmatpush1.bf16.msra.mxu0 0
      %604 = vmatprep.subr.bf16.mxu0 0
      %605 = vmatpush1.bf16.msra.mxu0 0
      %606 = vmatprep.subr.bf16.mxu0 0
      %607 = vmatpush1.bf16.msra.mxu0 0
      %608 = vmatprep.subr.bf16.mxu0 0
      %609 = vmatpush1.bf16.msra.mxu0 0
      %610 = vmatprep.subr.bf16.mxu0 0
      %611 = vmatpush1.bf16.msra.mxu0 0
      %612 = vmatprep.subr.bf16.mxu0 0
      %613 = vmatpush1.bf16.msra.mxu0 0
      %614 = vmatprep.subr.bf16.mxu0 0
      %615 = vmatpush1.bf16.msra.mxu0 0
      %616 = vmatprep.subr.bf16.mxu0 0
      %617 = vmatpush1.bf16.msra.mxu0 0
      %618 = vmatprep.subr.bf16.mxu0 0
      %619 = vmatpush1.bf16.msra.mxu0 0
      %620 = vmatprep.subr.bf16.mxu0 0
      %621 = vmatpush1.bf16.msra.mxu0 0
      %622 = vmatprep.subr.bf16.mxu0 0
      %623 = vmatpush1.bf16.msra.mxu0 0
      %624 = vmatprep.subr.bf16.mxu0 0
      %625 = vmatpush1.bf16.msra.mxu0 0
      %626 = vmatprep.subr.bf16.mxu0 0
      %627 = vmatpush1.bf16.msra.mxu0 0
      %628 = vmatprep.subr.bf16.mxu0 0
      %629 = vmatpush1.bf16.msra.mxu0 0
      %630 = vmatprep.mubr.bf16.mxu0 0
      %631 = vmatmul.mubr.bf16.gmra.mrb[0].mxu0 %v546
      %v632 = vpop.f32.mrb[0].mxu0
      %v633 = vadd.f32 0.0, %v632
      %v634 = vpop.f32.mrb[0].mxu0
      %v635 = vpop.f32.mrb[0].mxu0
      %v636 = vpop.f32.mrb[0].mxu0
      %637 = vdwg.mxu0
      %v638 = vadd.f32 %v466, %v592
      %v639 = vadd.f32 %v468, %v594
      %v640 = vadd.f32 %v507, %v633
      %v641 = vld [vmem:[%s249] sm:$0xff]
      %s642 = scalar_lea.vmem %s253, 12
      %v643 = vld [vmem:[%s642] sm:$0xf]
      %v645 = vcombine.high %v641, %v641
      %v647 = vunpack.c.l.s4 1983009808
      %v648 = vunpack.c.0.s8 %v647
      %v649 = vlaneseq
      %v650 = vshrl.u32 %v649, 7
      %v651 = vsub.s32 %v648, %v650
      %v652 = vrot.slane %v641, %v651
      %v654 = vunpack.c.l.s4 1983009808
      %v655 = vunpack.c.0.s8 %v654
      %v656 = vlaneseq
      %v657 = vshrl.u32 %v656, 7
      %v658 = vsub.s32 %v655, %v657
      %v659 = vrot.slane %v645, %v658
      %v660 = vcombine.high %v652, %v652
      %v661 = vcombine.high %v659, %v659
      %662 = vrot.lane.b32.xlu0 %v652, 110
      %v663 = vpop.permute.xlu0 %662
      %664 = vrot.lane.b32.xlu0 %v660, 110
      %v665 = vpop.permute.xlu0 %664
      %666 = vrot.lane.b32.xlu0 %v659, 110
      %v667 = vpop.permute.xlu0 %666
      %668 = vrot.lane.b32.xlu0 %v661, 110
      %v669 = vpop.permute.xlu0 %668
      %vm670 = vcmask 900096
      %v671 = vsel %vm670, %v663, %v665
      %v672 = vsel %vm670, %v665, %v667
      %v673 = vsel %vm670, %v667, %v669
      %v675 = vsel %vm307, %v643, 0
      %v678 = vsel %vm311, %v671, 0
      %v681 = vsel %vm311, %v672, 0
      %v684 = vsel %vm311, %v673, 0
      %686 = vmatprep.subr.bf16.mxu0 %v681
      %687 = vmatpush1.bf16.msra.mxu0 %v678
      %688 = vmatprep.subr.bf16.mxu0 0
      %689 = vmatpush1.bf16.msra.mxu0 0
      %690 = vmatprep.subr.bf16.mxu0 0
      %691 = vmatpush1.bf16.msra.mxu0 0
      %692 = vmatprep.subr.bf16.mxu0 0
      %693 = vmatpush1.bf16.msra.mxu0 0
      %694 = vmatprep.subr.bf16.mxu0 0
      %695 = vmatpush1.bf16.msra.mxu0 0
      %696 = vmatprep.subr.bf16.mxu0 0
      %697 = vmatpush1.bf16.msra.mxu0 0
      %698 = vmatprep.subr.bf16.mxu0 0
      %699 = vmatpush1.bf16.msra.mxu0 0
      %700 = vmatprep.subr.bf16.mxu0 0
      %701 = vmatpush1.bf16.msra.mxu0 0
      %702 = vmatprep.subr.bf16.mxu0 0
      %703 = vmatpush1.bf16.msra.mxu0 0
      %704 = vmatprep.subr.bf16.mxu0 0
      %705 = vmatpush1.bf16.msra.mxu0 0
      %706 = vmatprep.subr.bf16.mxu0 0
      %707 = vmatpush1.bf16.msra.mxu0 0
      %708 = vmatprep.subr.bf16.mxu0 0
      %709 = vmatpush1.bf16.msra.mxu0 0
      %710 = vmatprep.subr.bf16.mxu0 0
      %711 = vmatpush1.bf16.msra.mxu0 0
      %712 = vmatprep.subr.bf16.mxu0 0
      %713 = vmatpush1.bf16.msra.mxu0 0
      %714 = vmatprep.subr.bf16.mxu0 0
      %715 = vmatpush1.bf16.msra.mxu0 0
      %716 = vmatprep.subr.bf16.mxu0 0
      %717 = vmatpush1.bf16.msra.mxu0 0
      %718 = vmatprep.mubr.bf16.mxu0 0
      %719 = vmatmul.mubr.bf16.gmra.mrb[0].mxu0 %v675
      %v720 = vpop.f32.mrb[0].mxu0
      %v721 = vadd.f32 0.0, %v720
      %v722 = vpop.f32.mrb[0].mxu0
      %v723 = vadd.f32 0.0, %v722
      %v724 = vpop.f32.mrb[0].mxu0
      %v725 = vpop.f32.mrb[0].mxu0
      %726 = vdwg.mxu0
      %727 = vmatprep.subr.bf16.mxu0 0
      %728 = vmatpush1.bf16.msra.mxu0 %v684
      %729 = vmatprep.subr.bf16.mxu0 0
      %730 = vmatpush1.bf16.msra.mxu0 0
      %731 = vmatprep.subr.bf16.mxu0 0
      %732 = vmatpush1.bf16.msra.mxu0 0
      %733 = vmatprep.subr.bf16.mxu0 0
      %734 = vmatpush1.bf16.msra.mxu0 0
      %735 = vmatprep.subr.bf16.mxu0 0
      %736 = vmatpush1.bf16.msra.mxu0 0
      %737 = vmatprep.subr.bf16.mxu0 0
      %738 = vmatpush1.bf16.msra.mxu0 0
      %739 = vmatprep.subr.bf16.mxu0 0
      %740 = vmatpush1.bf16.msra.mxu0 0
      %741 = vmatprep.subr.bf16.mxu0 0
      %742 = vmatpush1.bf16.msra.mxu0 0
      %743 = vmatprep.subr.bf16.mxu0 0
      %744 = vmatpush1.bf16.msra.mxu0 0
      %745 = vmatprep.subr.bf16.mxu0 0
      %746 = vmatpush1.bf16.msra.mxu0 0
      %747 = vmatprep.subr.bf16.mxu0 0
      %748 = vmatpush1.bf16.msra.mxu0 0
      %749 = vmatprep.subr.bf16.mxu0 0
      %750 = vmatpush1.bf16.msra.mxu0 0
      %751 = vmatprep.subr.bf16.mxu0 0
      %752 = vmatpush1.bf16.msra.mxu0 0
      %753 = vmatprep.subr.bf16.mxu0 0
      %754 = vmatpush1.bf16.msra.mxu0 0
      %755 = vmatprep.subr.bf16.mxu0 0
      %756 = vmatpush1.bf16.msra.mxu0 0
      %757 = vmatprep.subr.bf16.mxu0 0
      %758 = vmatpush1.bf16.msra.mxu0 0
      %759 = vmatprep.mubr.bf16.mxu0 0
      %760 = vmatmul.mubr.bf16.gmra.mrb[0].mxu0 %v675
      %v761 = vpop.f32.mrb[0].mxu0
      %v762 = vadd.f32 0.0, %v761
      %v763 = vpop.f32.mrb[0].mxu0
      %v764 = vpop.f32.mrb[0].mxu0
      %v765 = vpop.f32.mrb[0].mxu0
      %766 = vdwg.mxu0
      %v767 = vadd.f32 %v638, %v721
      %v768 = vadd.f32 %v639, %v723
      %v769 = vadd.f32 %v640, %v762
      %v770 = vld [vmem:[%s249] sm:$0xff]
      %s771 = scalar_lea.vmem %s253, 16
      %v772 = vld [vmem:[%s771] sm:$0xf]
      %v774 = vcombine.high %v770, %v770
      %v776 = vunpack.c.l.s4 1983009808
      %v777 = vunpack.c.0.s8 %v776
      %v778 = vlaneseq
      %v779 = vshrl.u32 %v778, 7
      %v780 = vsub.s32 %v777, %v779
      %v781 = vrot.slane %v770, %v780
      %v783 = vunpack.c.l.s4 1983009808
      %v784 = vunpack.c.0.s8 %v783
      %v785 = vlaneseq
      %v786 = vshrl.u32 %v785, 7
      %v787 = vsub.s32 %v784, %v786
      %v788 = vrot.slane %v774, %v787
      %v789 = vcombine.high %v781, %v781
      %v790 = vcombine.high %v788, %v788
      %791 = vrot.lane.b32.xlu0 %v781, 109
      %v792 = vpop.permute.xlu0 %791
      %793 = vrot.lane.b32.xlu0 %v789, 109
      %v794 = vpop.permute.xlu0 %793
      %795 = vrot.lane.b32.xlu0 %v788, 109
      %v796 = vpop.permute.xlu0 %795
      %797 = vrot.lane.b32.xlu0 %v790, 109
      %v798 = vpop.permute.xlu0 %797
      %vm799 = vcmask 891904
      %v800 = vsel %vm799, %v792, %v794
      %v801 = vsel %vm799, %v794, %v796
      %v802 = vsel %vm799, %v796, %v798
      %v804 = vsel %vm307, %v772, 0
      %v807 = vsel %vm311, %v800, 0
      %v810 = vsel %vm311, %v801, 0
      %v813 = vsel %vm311, %v802, 0
      %815 = vmatprep.subr.bf16.mxu0 %v810
      %816 = vmatpush1.bf16.msra.mxu0 %v807
      %817 = vmatprep.subr.bf16.mxu0 0
      %818 = vmatpush1.bf16.msra.mxu0 0
      %819 = vmatprep.subr.bf16.mxu0 0
      %820 = vmatpush1.bf16.msra.mxu0 0
      %821 = vmatprep.subr.bf16.mxu0 0
      %822 = vmatpush1.bf16.msra.mxu0 0
      %823 = vmatprep.subr.bf16.mxu0 0
      %824 = vmatpush1.bf16.msra.mxu0 0
      %825 = vmatprep.subr.bf16.mxu0 0
      %826 = vmatpush1.bf16.msra.mxu0 0
      %827 = vmatprep.subr.bf16.mxu0 0
      %828 = vmatpush1.bf16.msra.mxu0 0
      %829 = vmatprep.subr.bf16.mxu0 0
      %830 = vmatpush1.bf16.msra.mxu0 0
      %831 = vmatprep.subr.bf16.mxu0 0
      %832 = vmatpush1.bf16.msra.mxu0 0
      %833 = vmatprep.subr.bf16.mxu0 0
      %834 = vmatpush1.bf16.msra.mxu0 0
      %835 = vmatprep.subr.bf16.mxu0 0
      %836 = vmatpush1.bf16.msra.mxu0 0
      %837 = vmatprep.subr.bf16.mxu0 0
      %838 = vmatpush1.bf16.msra.mxu0 0
      %839 = vmatprep.subr.bf16.mxu0 0
      %840 = vmatpush1.bf16.msra.mxu0 0
      %841 = vmatprep.subr.bf16.mxu0 0
      %842 = vmatpush1.bf16.msra.mxu0 0
      %843 = vmatprep.subr.bf16.mxu0 0
      %844 = vmatpush1.bf16.msra.mxu0 0
      %845 = vmatprep.subr.bf16.mxu0 0
      %846 = vmatpush1.bf16.msra.mxu0 0
      %847 = vmatprep.mubr.bf16.mxu0 0
      %848 = vmatmul.mubr.bf16.gmra.mrb[0].mxu0 %v804
      %v849 = vpop.f32.mrb[0].mxu0
      %v850 = vadd.f32 0.0, %v849
      %v851 = vpop.f32.mrb[0].mxu0
      %v852 = vadd.f32 0.0, %v851
      %v853 = vpop.f32.mrb[0].mxu0
      %v854 = vpop.f32.mrb[0].mxu0
      %855 = vdwg.mxu0
      %856 = vmatprep.subr.bf16.mxu0 0
      %857 = vmatpush1.bf16.msra.mxu0 %v813
      %858 = vmatprep.subr.bf16.mxu0 0
      %859 = vmatpush1.bf16.msra.mxu0 0
      %860 = vmatprep.subr.bf16.mxu0 0
      %861 = vmatpush1.bf16.msra.mxu0 0
      %862 = vmatprep.subr.bf16.mxu0 0
      %863 = vmatpush1.bf16.msra.mxu0 0
      %864 = vmatprep.subr.bf16.mxu0 0
      %865 = vmatpush1.bf16.msra.mxu0 0
      %866 = vmatprep.subr.bf16.mxu0 0
      %867 = vmatpush1.bf16.msra.mxu0 0
      %868 = vmatprep.subr.bf16.mxu0 0
      %869 = vmatpush1.bf16.msra.mxu0 0
      %870 = vmatprep.subr.bf16.mxu0 0
      %871 = vmatpush1.bf16.msra.mxu0 0
      %872 = vmatprep.subr.bf16.mxu0 0
      %873 = vmatpush1.bf16.msra.mxu0 0
      %874 = vmatprep.subr.bf16.mxu0 0
      %875 = vmatpush1.bf16.msra.mxu0 0
      %876 = vmatprep.subr.bf16.mxu0 0
      %877 = vmatpush1.bf16.msra.mxu0 0
      %878 = vmatprep.subr.bf16.mxu0 0
      %879 = vmatpush1.bf16.msra.mxu0 0
      %880 = vmatprep.subr.bf16.mxu0 0
      %881 = vmatpush1.bf16.msra.mxu0 0
      %882 = vmatprep.subr.bf16.mxu0 0
      %883 = vmatpush1.bf16.msra.mxu0 0
      %884 = vmatprep.subr.bf16.mxu0 0
      %885 = vmatpush1.bf16.msra.mxu0 0
      %886 = vmatprep.subr.bf16.mxu0 0
      %887 = vmatpush1.bf16.msra.mxu0 0
      %888 = vmatprep.mubr.bf16.mxu0 0
      %889 = vmatmul.mubr.bf16.gmra.mrb[0].mxu0 %v804
      %v890 = vpop.f32.mrb[0].mxu0
      %v891 = vadd.f32 0.0, %v890
      %v892 = vpop.f32.mrb[0].mxu0
      %v893 = vpop.f32.mrb[0].mxu0
      %v894 = vpop.f32.mrb[0].mxu0
      %895 = vdwg.mxu0
      %v896 = vadd.f32 %v767, %v850
      %v897 = vadd.f32 %v768, %v852
      %v898 = vadd.f32 %v769, %v891
      %v899 = vld [vmem:[%s249] sm:$0xff]
      %s900 = scalar_lea.vmem %s253, 20
      %v901 = vld [vmem:[%s900] sm:$0xf]
      %v903 = vcombine.high %v899, %v899
      %v905 = vunpack.c.l.s4 1983009808
      %v906 = vunpack.c.0.s8 %v905
      %v907 = vlaneseq
      %v908 = vshrl.u32 %v907, 7
      %v909 = vsub.s32 %v906, %v908
      %v910 = vrot.slane %v899, %v909
      %v912 = vunpack.c.l.s4 1983009808
      %v913 = vunpack.c.0.s8 %v912
      %v914 = vlaneseq
      %v915 = vshrl.u32 %v914, 7
      %v916 = vsub.s32 %v913, %v915
      %v917 = vrot.slane %v903, %v916
      %v918 = vcombine.high %v910, %v910
      %v919 = vcombine.high %v917, %v917
      %920 = vrot.lane.b32.xlu0 %v910, 108
      %v921 = vpop.permute.xlu0 %920
      %922 = vrot.lane.b32.xlu0 %v918, 108
      %v923 = vpop.permute.xlu0 %922
      %924 = vrot.lane.b32.xlu0 %v917, 108
      %v925 = vpop.permute.xlu0 %924
      %926 = vrot.lane.b32.xlu0 %v919, 108
      %v927 = vpop.permute.xlu0 %926
      %vm928 = vcmask 883712
      %v929 = vsel %vm928, %v921, %v923
      %v930 = vsel %vm928, %v923, %v925
      %v931 = vsel %vm928, %v925, %v927
      %v933 = vsel %vm307, %v901, 0
      %v936 = vsel %vm311, %v929, 0
      %v939 = vsel %vm311, %v930, 0
      %v942 = vsel %vm311, %v931, 0
      %944 = vmatprep.subr.bf16.mxu0 %v939
      %945 = vmatpush1.bf16.msra.mxu0 %v936
      %946 = vmatprep.subr.bf16.mxu0 0
      %947 = vmatpush1.bf16.msra.mxu0 0
      %948 = vmatprep.subr.bf16.mxu0 0
      %949 = vmatpush1.bf16.msra.mxu0 0
      %950 = vmatprep.subr.bf16.mxu0 0
      %951 = vmatpush1.bf16.msra.mxu0 0
      %952 = vmatprep.subr.bf16.mxu0 0
      %953 = vmatpush1.bf16.msra.mxu0 0
      %954 = vmatprep.subr.bf16.mxu0 0
      %955 = vmatpush1.bf16.msra.mxu0 0
      %956 = vmatprep.subr.bf16.mxu0 0
      %957 = vmatpush1.bf16.msra.mxu0 0
      %958 = vmatprep.subr.bf16.mxu0 0
      %959 = vmatpush1.bf16.msra.mxu0 0
      %960 = vmatprep.subr.bf16.mxu0 0
      %961 = vmatpush1.bf16.msra.mxu0 0
      %962 = vmatprep.subr.bf16.mxu0 0
      %963 = vmatpush1.bf16.msra.mxu0 0
      %964 = vmatprep.subr.bf16.mxu0 0
      %965 = vmatpush1.bf16.msra.mxu0 0
      %966 = vmatprep.subr.bf16.mxu0 0
      %967 = vmatpush1.bf16.msra.mxu0 0
      %968 = vmatprep.subr.bf16.mxu0 0
      %969 = vmatpush1.bf16.msra.mxu0 0
      %970 = vmatprep.subr.bf16.mxu0 0
      %971 = vmatpush1.bf16.msra.mxu0 0
      %972 = vmatprep.subr.bf16.mxu0 0
      %973 = vmatpush1.bf16.msra.mxu0 0
      %974 = vmatprep.subr.bf16.mxu0 0
      %975 = vmatpush1.bf16.msra.mxu0 0
      %976 = vmatprep.mubr.bf16.mxu0 0
      %977 = vmatmul.mubr.bf16.gmra.mrb[0].mxu0 %v933
      %v978 = vpop.f32.mrb[0].mxu0
      %v979 = vadd.f32 0.0, %v978
      %v980 = vpop.f32.mrb[0].mxu0
      %v981 = vadd.f32 0.0, %v980
      %v982 = vpop.f32.mrb[0].mxu0
      %v983 = vpop.f32.mrb[0].mxu0
      %984 = vdwg.mxu0
      %985 = vmatprep.subr.bf16.mxu0 0
      %986 = vmatpush1.bf16.msra.mxu0 %v942
      %987 = vmatprep.subr.bf16.mxu0 0
      %988 = vmatpush1.bf16.msra.mxu0 0
      %989 = vmatprep.subr.bf16.mxu0 0
      %990 = vmatpush1.bf16.msra.mxu0 0
      %991 = vmatprep.subr.bf16.mxu0 0
      %992 = vmatpush1.bf16.msra.mxu0 0
      %993 = vmatprep.subr.bf16.mxu0 0
      %994 = vmatpush1.bf16.msra.mxu0 0
      %995 = vmatprep.subr.bf16.mxu0 0
      %996 = vmatpush1.bf16.msra.mxu0 0
      %997 = vmatprep.subr.bf16.mxu0 0
      %998 = vmatpush1.bf16.msra.mxu0 0
      %999 = vmatprep.subr.bf16.mxu0 0
      %1000 = vmatpush1.bf16.msra.mxu0 0
      %1001 = vmatprep.subr.bf16.mxu0 0
      %1002 = vmatpush1.bf16.msra.mxu0 0
      %1003 = vmatprep.subr.bf16.mxu0 0
      %1004 = vmatpush1.bf16.msra.mxu0 0
      %1005 = vmatprep.subr.bf16.mxu0 0
      %1006 = vmatpush1.bf16.msra.mxu0 0
      %1007 = vmatprep.subr.bf16.mxu0 0
      %1008 = vmatpush1.bf16.msra.mxu0 0
      %1009 = vmatprep.subr.bf16.mxu0 0
      %1010 = vmatpush1.bf16.msra.mxu0 0
      %1011 = vmatprep.subr.bf16.mxu0 0
      %1012 = vmatpush1.bf16.msra.mxu0 0
      %1013 = vmatprep.subr.bf16.mxu0 0
      %1014 = vmatpush1.bf16.msra.mxu0 0
      %1015 = vmatprep.subr.bf16.mxu0 0
      %1016 = vmatpush1.bf16.msra.mxu0 0
      %1017 = vmatprep.mubr.bf16.mxu0 0
      %1018 = vmatmul.mubr.bf16.gmra.mrb[0].mxu0 %v933
      %v1019 = vpop.f32.mrb[0].mxu0
      %v1020 = vadd.f32 0.0, %v1019
      %v1021 = vpop.f32.mrb[0].mxu0
      %v1022 = vpop.f32.mrb[0].mxu0
      %v1023 = vpop.f32.mrb[0].mxu0
      %1024 = vdwg.mxu0
      %v1025 = vadd.f32 %v896, %v979
      %v1026 = vadd.f32 %v897, %v981
      %v1027 = vadd.f32 %v898, %v1020
      %v1028 = vld [vmem:[%s249] sm:$0xff]
      %s1029 = scalar_lea.vmem %s253, 24
      %v1030 = vld [vmem:[%s1029] sm:$0xf]
      %v1032 = vcombine.high %v1028, %v1028
      %v1034 = vunpack.c.l.s4 1983009808
      %v1035 = vunpack.c.0.s8 %v1034
      %v1036 = vlaneseq
      %v1037 = vshrl.u32 %v1036, 7
      %v1038 = vsub.s32 %v1035, %v1037
      %v1039 = vrot.slane %v1028, %v1038
      %v1041 = vunpack.c.l.s4 1983009808
      %v1042 = vunpack.c.0.s8 %v1041
      %v1043 = vlaneseq
      %v1044 = vshrl.u32 %v1043, 7
      %v1045 = vsub.s32 %v1042, %v1044
      %v1046 = vrot.slane %v1032, %v1045
      %v1047 = vcombine.high %v1039, %v1039
      %v1048 = vcombine.high %v1046, %v1046
      %1049 = vrot.lane.b32.xlu0 %v1039, 92
      %v1050 = vpop.permute.xlu0 %1049
      %1051 = vrot.lane.b32.xlu0 %v1047, 92
      %v1052 = vpop.permute.xlu0 %1051
      %1053 = vrot.lane.b32.xlu0 %v1046, 92
      %v1054 = vpop.permute.xlu0 %1053
      %1055 = vrot.lane.b32.xlu0 %v1048, 92
      %v1056 = vpop.permute.xlu0 %1055
      %vm1057 = vcmask 752640
      %v1058 = vsel %vm1057, %v1050, %v1052
      %v1059 = vsel %vm1057, %v1052, %v1054
      %v1060 = vsel %vm1057, %v1054, %v1056
      %v1062 = vsel %vm307, %v1030, 0
      %v1065 = vsel %vm311, %v1058, 0
      %v1068 = vsel %vm311, %v1059, 0
      %v1071 = vsel %vm311, %v1060, 0
      %1073 = vmatprep.subr.bf16.mxu0 %v1068
      %1074 = vmatpush1.bf16.msra.mxu0 %v1065
      %1075 = vmatprep.subr.bf16.mxu0 0
      %1076 = vmatpush1.bf16.msra.mxu0 0
      %1077 = vmatprep.subr.bf16.mxu0 0
      %1078 = vmatpush1.bf16.msra.mxu0 0
      %1079 = vmatprep.subr.bf16.mxu0 0
      %1080 = vmatpush1.bf16.msra.mxu0 0
      %1081 = vmatprep.subr.bf16.mxu0 0
      %1082 = vmatpush1.bf16.msra.mxu0 0
      %1083 = vmatprep.subr.bf16.mxu0 0
      %1084 = vmatpush1.bf16.msra.mxu0 0
      %1085 = vmatprep.subr.bf16.mxu0 0
      %1086 = vmatpush1.bf16.msra.mxu0 0
      %1087 = vmatprep.subr.bf16.mxu0 0
      %1088 = vmatpush1.bf16.msra.mxu0 0
      %1089 = vmatprep.subr.bf16.mxu0 0
      %1090 = vmatpush1.bf16.msra.mxu0 0
      %1091 = vmatprep.subr.bf16.mxu0 0
      %1092 = vmatpush1.bf16.msra.mxu0 0
      %1093 = vmatprep.subr.bf16.mxu0 0
      %1094 = vmatpush1.bf16.msra.mxu0 0
      %1095 = vmatprep.subr.bf16.mxu0 0
      %1096 = vmatpush1.bf16.msra.mxu0 0
      %1097 = vmatprep.subr.bf16.mxu0 0
      %1098 = vmatpush1.bf16.msra.mxu0 0
      %1099 = vmatprep.subr.bf16.mxu0 0
      %1100 = vmatpush1.bf16.msra.mxu0 0
      %1101 = vmatprep.subr.bf16.mxu0 0
      %1102 = vmatpush1.bf16.msra.mxu0 0
      %1103 = vmatprep.subr.bf16.mxu0 0
      %1104 = vmatpush1.bf16.msra.mxu0 0
      %1105 = vmatprep.mubr.bf16.mxu0 0
      %1106 = vmatmul.mubr.bf16.gmra.mrb[0].mxu0 %v1062
      %v1107 = vpop.f32.mrb[0].mxu0
      %v1108 = vadd.f32 0.0, %v1107
      %v1109 = vpop.f32.mrb[0].mxu0
      %v1110 = vadd.f32 0.0, %v1109
      %v1111 = vpop.f32.mrb[0].mxu0
      %v1112 = vpop.f32.mrb[0].mxu0
      %1113 = vdwg.mxu0
      %1114 = vmatprep.subr.bf16.mxu0 0
      %1115 = vmatpush1.bf16.msra.mxu0 %v1071
      %1116 = vmatprep.subr.bf16.mxu0 0
      %1117 = vmatpush1.bf16.msra.mxu0 0
      %1118 = vmatprep.subr.bf16.mxu0 0
      %1119 = vmatpush1.bf16.msra.mxu0 0
      %1120 = vmatprep.subr.bf16.mxu0 0
      %1121 = vmatpush1.bf16.msra.mxu0 0
      %1122 = vmatprep.subr.bf16.mxu0 0
      %1123 = vmatpush1.bf16.msra.mxu0 0
      %1124 = vmatprep.subr.bf16.mxu0 0
      %1125 = vmatpush1.bf16.msra.mxu0 0
      %1126 = vmatprep.subr.bf16.mxu0 0
      %1127 = vmatpush1.bf16.msra.mxu0 0
      %1128 = vmatprep.subr.bf16.mxu0 0
      %1129 = vmatpush1.bf16.msra.mxu0 0
      %1130 = vmatprep.subr.bf16.mxu0 0
      %1131 = vmatpush1.bf16.msra.mxu0 0
      %1132 = vmatprep.subr.bf16.mxu0 0
      %1133 = vmatpush1.bf16.msra.mxu0 0
      %1134 = vmatprep.subr.bf16.mxu0 0
      %1135 = vmatpush1.bf16.msra.mxu0 0
      %1136 = vmatprep.subr.bf16.mxu0 0
      %1137 = vmatpush1.bf16.msra.mxu0 0
      %1138 = vmatprep.subr.bf16.mxu0 0
      %1139 = vmatpush1.bf16.msra.mxu0 0
      %1140 = vmatprep.subr.bf16.mxu0 0
      %1141 = vmatpush1.bf16.msra.mxu0 0
      %1142 = vmatprep.subr.bf16.mxu0 0
      %1143 = vmatpush1.bf16.msra.mxu0 0
      %1144 = vmatprep.subr.bf16.mxu0 0
      %1145 = vmatpush1.bf16.msra.mxu0 0
      %1146 = vmatprep.mubr.bf16.mxu0 0
      %1147 = vmatmul.mubr.bf16.gmra.mrb[0].mxu0 %v1062
      %v1148 = vpop.f32.mrb[0].mxu0
      %v1149 = vadd.f32 0.0, %v1148
      %v1150 = vpop.f32.mrb[0].mxu0
      %v1151 = vpop.f32.mrb[0].mxu0
      %v1152 = vpop.f32.mrb[0].mxu0
      %1153 = vdwg.mxu0
      %v1154 = vadd.f32 %v1025, %v1108
      %v1155 = vadd.f32 %v1026, %v1110
      %v1156 = vadd.f32 %v1027, %v1149
      %v1157 = vld [vmem:[%s249] sm:$0xff]
      %s1158 = scalar_lea.vmem %s253, 28
      %v1159 = vld [vmem:[%s1158] sm:$0xf]
      %v1161 = vcombine.high %v1157, %v1157
      %v1163 = vunpack.c.l.s4 1983009808
      %v1164 = vunpack.c.0.s8 %v1163
      %v1165 = vlaneseq
      %v1166 = vshrl.u32 %v1165, 7
      %v1167 = vsub.s32 %v1164, %v1166
      %v1168 = vrot.slane %v1157, %v1167
      %v1170 = vunpack.c.l.s4 1983009808
      %v1171 = vunpack.c.0.s8 %v1170
      %v1172 = vlaneseq
      %v1173 = vshrl.u32 %v1172, 7
      %v1174 = vsub.s32 %v1171, %v1173
      %v1175 = vrot.slane %v1161, %v1174
      %v1176 = vcombine.high %v1168, %v1168
      %v1177 = vcombine.high %v1175, %v1175
      %1178 = vrot.lane.b32.xlu0 %v1168, 91
      %v1179 = vpop.permute.xlu0 %1178
      %1180 = vrot.lane.b32.xlu0 %v1176, 91
      %v1181 = vpop.permute.xlu0 %1180
      %1182 = vrot.lane.b32.xlu0 %v1175, 91
      %v1183 = vpop.permute.xlu0 %1182
      %1184 = vrot.lane.b32.xlu0 %v1177, 91
      %v1185 = vpop.permute.xlu0 %1184
      %vm1186 = vcmask 744448
      %v1187 = vsel %vm1186, %v1179, %v1181
      %v1188 = vsel %vm1186, %v1181, %v1183
      %v1189 = vsel %vm1186, %v1183, %v1185
      %v1191 = vsel %vm307, %v1159, 0
      %v1194 = vsel %vm311, %v1187, 0
      %v1197 = vsel %vm311, %v1188, 0
      %v1200 = vsel %vm311, %v1189, 0
      %1202 = vmatprep.subr.bf16.mxu0 %v1197
      %1203 = vmatpush1.bf16.msra.mxu0 %v1194
      %1204 = vmatprep.subr.bf16.mxu0 0
      %1205 = vmatpush1.bf16.msra.mxu0 0
      %1206 = vmatprep.subr.bf16.mxu0 0
      %1207 = vmatpush1.bf16.msra.mxu0 0
      %1208 = vmatprep.subr.bf16.mxu0 0
      %1209 = vmatpush1.bf16.msra.mxu0 0
      %1210 = vmatprep.subr.bf16.mxu0 0
      %1211 = vmatpush1.bf16.msra.mxu0 0
      %1212 = vmatprep.subr.bf16.mxu0 0
      %1213 = vmatpush1.bf16.msra.mxu0 0
      %1214 = vmatprep.subr.bf16.mxu0 0
      %1215 = vmatpush1.bf16.msra.mxu0 0
      %1216 = vmatprep.subr.bf16.mxu0 0
      %1217 = vmatpush1.bf16.msra.mxu0 0
      %1218 = vmatprep.subr.bf16.mxu0 0
      %1219 = vmatpush1.bf16.msra.mxu0 0
      %1220 = vmatprep.subr.bf16.mxu0 0
      %1221 = vmatpush1.bf16.msra.mxu0 0
      %1222 = vmatprep.subr.bf16.mxu0 0
      %1223 = vmatpush1.bf16.msra.mxu0 0
      %1224 = vmatprep.subr.bf16.mxu0 0
      %1225 = vmatpush1.bf16.msra.mxu0 0
      %1226 = vmatprep.subr.bf16.mxu0 0
      %1227 = vmatpush1.bf16.msra.mxu0 0
      %1228 = vmatprep.subr.bf16.mxu0 0
      %1229 = vmatpush1.bf16.msra.mxu0 0
      %1230 = vmatprep.subr.bf16.mxu0 0
      %1231 = vmatpush1.bf16.msra.mxu0 0
      %1232 = vmatprep.subr.bf16.mxu0 0
      %1233 = vmatpush1.bf16.msra.mxu0 0
      %1234 = vmatprep.mubr.bf16.mxu0 0
      %1235 = vmatmul.mubr.bf16.gmra.mrb[0].mxu0 %v1191
      %v1236 = vpop.f32.mrb[0].mxu0
      %v1237 = vadd.f32 0.0, %v1236
      %v1238 = vpop.f32.mrb[0].mxu0
      %v1239 = vadd.f32 0.0, %v1238
      %v1240 = vpop.f32.mrb[0].mxu0
      %v1241 = vpop.f32.mrb[0].mxu0
      %1242 = vdwg.mxu0
      %1243 = vmatprep.subr.bf16.mxu0 0
      %1244 = vmatpush1.bf16.msra.mxu0 %v1200
      %1245 = vmatprep.subr.bf16.mxu0 0
      %1246 = vmatpush1.bf16.msra.mxu0 0
      %1247 = vmatprep.subr.bf16.mxu0 0
      %1248 = vmatpush1.bf16.msra.mxu0 0
      %1249 = vmatprep.subr.bf16.mxu0 0
      %1250 = vmatpush1.bf16.msra.mxu0 0
      %1251 = vmatprep.subr.bf16.mxu0 0
      %1252 = vmatpush1.bf16.msra.mxu0 0
      %1253 = vmatprep.subr.bf16.mxu0 0
      %1254 = vmatpush1.bf16.msra.mxu0 0
      %1255 = vmatprep.subr.bf16.mxu0 0
      %1256 = vmatpush1.bf16.msra.mxu0 0
      %1257 = vmatprep.subr.bf16.mxu0 0
      %1258 = vmatpush1.bf16.msra.mxu0 0
      %1259 = vmatprep.subr.bf16.mxu0 0
      %1260 = vmatpush1.bf16.msra.mxu0 0
      %1261 = vmatprep.subr.bf16.mxu0 0
      %1262 = vmatpush1.bf16.msra.mxu0 0
      %1263 = vmatprep.subr.bf16.mxu0 0
      %1264 = vmatpush1.bf16.msra.mxu0 0
      %1265 = vmatprep.subr.bf16.mxu0 0
      %1266 = vmatpush1.bf16.msra.mxu0 0
      %1267 = vmatprep.subr.bf16.mxu0 0
      %1268 = vmatpush1.bf16.msra.mxu0 0
      %1269 = vmatprep.subr.bf16.mxu0 0
      %1270 = vmatpush1.bf16.msra.mxu0 0
      %1271 = vmatprep.subr.bf16.mxu0 0
      %1272 = vmatpush1.bf16.msra.mxu0 0
      %1273 = vmatprep.subr.bf16.mxu0 0
      %1274 = vmatpush1.bf16.msra.mxu0 0
      %1275 = vmatprep.mubr.bf16.mxu0 0
      %1276 = vmatmul.mubr.bf16.gmra.mrb[0].mxu0 %v1191
      %v1277 = vpop.f32.mrb[0].mxu0
      %v1278 = vadd.f32 0.0, %v1277
      %v1279 = vpop.f32.mrb[0].mxu0
      %v1280 = vpop.f32.mrb[0].mxu0
      %v1281 = vpop.f32.mrb[0].mxu0
      %1282 = vdwg.mxu0
      %v1283 = vadd.f32 %v1154, %v1237
      %v1284 = vadd.f32 %v1155, %v1239
      %v1285 = vadd.f32 %v1156, %v1278
      %v1286 = vld [vmem:[%s249] sm:$0xff]
      %s1287 = scalar_lea.vmem %s253, 32
      %v1288 = vld [vmem:[%s1287] sm:$0xf]
      %v1290 = vcombine.high %v1286, %v1286
      %v1292 = vunpack.c.l.s4 1983009808
      %v1293 = vunpack.c.0.s8 %v1292
      %v1294 = vlaneseq
      %v1295 = vshrl.u32 %v1294, 7
      %v1296 = vsub.s32 %v1293, %v1295
      %v1297 = vrot.slane %v1286, %v1296
      %v1299 = vunpack.c.l.s4 1983009808
      %v1300 = vunpack.c.0.s8 %v1299
      %v1301 = vlaneseq
      %v1302 = vshrl.u32 %v1301, 7
      %v1303 = vsub.s32 %v1300, %v1302
      %v1304 = vrot.slane %v1290, %v1303
      %v1305 = vcombine.high %v1297, %v1297
      %v1306 = vcombine.high %v1304, %v1304
      %1307 = vrot.lane.b32.xlu0 %v1297, 90
      %v1308 = vpop.permute.xlu0 %1307
      %1309 = vrot.lane.b32.xlu0 %v1305, 90
      %v1310 = vpop.permute.xlu0 %1309
      %1311 = vrot.lane.b32.xlu0 %v1304, 90
      %v1312 = vpop.permute.xlu0 %1311
      %1313 = vrot.lane.b32.xlu0 %v1306, 90
      %v1314 = vpop.permute.xlu0 %1313
      %vm1315 = vcmask 736256
      %v1316 = vsel %vm1315, %v1308, %v1310
      %v1317 = vsel %vm1315, %v1310, %v1312
      %v1318 = vsel %vm1315, %v1312, %v1314
      %v1320 = vsel %vm307, %v1288, 0
      %v1323 = vsel %vm311, %v1316, 0
      %v1326 = vsel %vm311, %v1317, 0
      %v1329 = vsel %vm311, %v1318, 0
      %1331 = vmatprep.subr.bf16.mxu0 %v1326
      %1332 = vmatpush1.bf16.msra.mxu0 %v1323
      %1333 = vmatprep.subr.bf16.mxu0 0
      %1334 = vmatpush1.bf16.msra.mxu0 0
      %1335 = vmatprep.subr.bf16.mxu0 0
      %1336 = vmatpush1.bf16.msra.mxu0 0
      %1337 = vmatprep.subr.bf16.mxu0 0
      %1338 = vmatpush1.bf16.msra.mxu0 0
      %1339 = vmatprep.subr.bf16.mxu0 0
      %1340 = vmatpush1.bf16.msra.mxu0 0
      %1341 = vmatprep.subr.bf16.mxu0 0
      %1342 = vmatpush1.bf16.msra.mxu0 0
      %1343 = vmatprep.subr.bf16.mxu0 0
      %1344 = vmatpush1.bf16.msra.mxu0 0
      %1345 = vmatprep.subr.bf16.mxu0 0
      %1346 = vmatpush1.bf16.msra.mxu0 0
      %1347 = vmatprep.subr.bf16.mxu0 0
      %1348 = vmatpush1.bf16.msra.mxu0 0
      %1349 = vmatprep.subr.bf16.mxu0 0
      %1350 = vmatpush1.bf16.msra.mxu0 0
      %1351 = vmatprep.subr.bf16.mxu0 0
      %1352 = vmatpush1.bf16.msra.mxu0 0
      %1353 = vmatprep.subr.bf16.mxu0 0
      %1354 = vmatpush1.bf16.msra.mxu0 0
      %1355 = vmatprep.subr.bf16.mxu0 0
      %1356 = vmatpush1.bf16.msra.mxu0 0
      %1357 = vmatprep.subr.bf16.mxu0 0
      %1358 = vmatpush1.bf16.msra.mxu0 0
      %1359 = vmatprep.subr.bf16.mxu0 0
      %1360 = vmatpush1.bf16.msra.mxu0 0
      %1361 = vmatprep.subr.bf16.mxu0 0
      %1362 = vmatpush1.bf16.msra.mxu0 0
      %1363 = vmatprep.mubr.bf16.mxu0 0
      %1364 = vmatmul.mubr.bf16.gmra.mrb[0].mxu0 %v1320
      %v1365 = vpop.f32.mrb[0].mxu0
      %v1366 = vadd.f32 0.0, %v1365
      %v1367 = vpop.f32.mrb[0].mxu0
      %v1368 = vadd.f32 0.0, %v1367
      %v1369 = vpop.f32.mrb[0].mxu0
      %v1370 = vpop.f32.mrb[0].mxu0
      %1371 = vdwg.mxu0
      %1372 = vmatprep.subr.bf16.mxu0 0
      %1373 = vmatpush1.bf16.msra.mxu0 %v1329
      %1374 = vmatprep.subr.bf16.mxu0 0
      %1375 = vmatpush1.bf16.msra.mxu0 0
      %1376 = vmatprep.subr.bf16.mxu0 0
      %1377 = vmatpush1.bf16.msra.mxu0 0
      %1378 = vmatprep.subr.bf16.mxu0 0
      %1379 = vmatpush1.bf16.msra.mxu0 0
      %1380 = vmatprep.subr.bf16.mxu0 0
      %1381 = vmatpush1.bf16.msra.mxu0 0
      %1382 = vmatprep.subr.bf16.mxu0 0
      %1383 = vmatpush1.bf16.msra.mxu0 0
      %1384 = vmatprep.subr.bf16.mxu0 0
      %1385 = vmatpush1.bf16.msra.mxu0 0
      %1386 = vmatprep.subr.bf16.mxu0 0
      %1387 = vmatpush1.bf16.msra.mxu0 0
      %1388 = vmatprep.subr.bf16.mxu0 0
      %1389 = vmatpush1.bf16.msra.mxu0 0
      %1390 = vmatprep.subr.bf16.mxu0 0
      %1391 = vmatpush1.bf16.msra.mxu0 0
      %1392 = vmatprep.subr.bf16.mxu0 0
      %1393 = vmatpush1.bf16.msra.mxu0 0
      %1394 = vmatprep.subr.bf16.mxu0 0
      %1395 = vmatpush1.bf16.msra.mxu0 0
      %1396 = vmatprep.subr.bf16.mxu0 0
      %1397 = vmatpush1.bf16.msra.mxu0 0
      %1398 = vmatprep.subr.bf16.mxu0 0
      %1399 = vmatpush1.bf16.msra.mxu0 0
      %1400 = vmatprep.subr.bf16.mxu0 0
      %1401 = vmatpush1.bf16.msra.mxu0 0
      %1402 = vmatprep.subr.bf16.mxu0 0
      %1403 = vmatpush1.bf16.msra.mxu0 0
      %1404 = vmatprep.mubr.bf16.mxu0 0
      %1405 = vmatmul.mubr.bf16.gmra.mrb[0].mxu0 %v1320
      %v1406 = vpop.f32.mrb[0].mxu0
      %v1407 = vadd.f32 0.0, %v1406
      %v1408 = vpop.f32.mrb[0].mxu0
      %v1409 = vpop.f32.mrb[0].mxu0
      %v1410 = vpop.f32.mrb[0].mxu0
      %1411 = vdwg.mxu0
      %v1412 = vadd.f32 %v1283, %v1366
      %v1413 = vadd.f32 %v1284, %v1368
      %v1414 = vadd.f32 %v1285, %v1407
      %v1415 = vld [vmem:[%s257] sm:$0xff]
      %1417 = vset.pattern.permute.xlu0 0
      %1418 = vperm.xlu0 %1417, %v1415
      %v1419 = vpop.permute.xlu0 %1418
      %v1421 = vmul.f32 %v1412, %v1419
      %v1422 = vmul.f32 %v1413, %v1419
      %v1423 = vmul.f32 %v1414, %v1419
      %v1424 = vld [vmem:[%s261] sm:$0xff]
      %1426 = vset.pattern.permute.xlu0 0
      %1427 = vperm.xlu0 %1426, %v1424
      %v1428 = vpop.permute.xlu0 %1427
      %v1430 = vadd.f32 %v1421, %v1428
      %v1431 = vadd.f32 %v1422, %v1428
      %v1432 = vadd.f32 %v1423, %v1428
      %v1433 = vmax.f32 %v1430, 0.0
      %v1434 = vmax.f32 %v1431, 0.0
      %v1435 = vmax.f32 %v1432, 0.0
      %1436 = vst [vmem:[%s270] sm:$0xff] %v1433
      %1437 = vst [vmem:[%s270 + $0x8] sm:$0xff] %v1434
      %1438 = vst [vmem:[%s270 + $0x10] sm:$0xff] %v1435
      %p1439 = scmp.lt.s32.totalorder %s19, 1
      %s1440 = scalar_select %p1439, %s19, 1
      %p1441 = scmp.lt.s32.totalorder %s20, 0
      %s1442 = scalar_select %p1441, %s20, 0
      %s1443 = smul.addr %s1442, 3
      %s1444 = smul.addr %s1440, 3
      %s1445 = sadd.s32 %s1443, %s1444
      %s1446 = smul.addr %s1445, 8
      %s1447 = scalar_lea.vmem %s4, %s1446
      // Predicated region
      $region37: #{basic_conv2d.1} parent=35 // pred_check
        %p1448 = pneg %p151
      $region38: #{basic_conv2d.1} parent=35 // pred_check_branch
        %1450 = sbr.rel (%p1448) target = $region40
      $region39: #{basic_conv2d.1} parent=35 // pred_region
        _
      $region40: #{basic_conv2d.1} parent=35 // pred_fallthru
        _
    $region36: #{basic_conv2d.1} parent=5 // pred_fallthru
      _
    %p1451 = scmp.le.s32.totalorder 2, %s10
    // Predicated region
    $region41: #{basic_conv2d.1} parent=5 // pred_check
      %p1452 = pneg %p1451
    $region42: #{basic_conv2d.1} parent=5 // pred_check_branch
      %1454 = sbr.rel (%p1452) target = $region44
    $region43: #{basic_conv2d.1} parent=5 // pred_region
      %s1455 = ssub.s32 %s10, 2
      // Predicated region
      $region45: #{basic_conv2d.1} parent=43 // pred_check
        %p1456 = pneg %p157
      $region46: #{basic_conv2d.1} parent=43 // pred_check_branch
        %1458 = sbr.rel (%p1456) target = $region48
      $region47: #{basic_conv2d.1} parent=43 // pred_region
        %p1459 = scmp.lt.s32.totalorder %s21, 1
        %s1460 = scalar_select %p1459, %s21, 1
        %p1461 = scmp.lt.s32.totalorder %s22, 0
        %s1462 = scalar_select %p1461, %s22, 0
        %s1463 = smul.addr %s1462, 3
        %s1464 = smul.addr %s1460, 3
        %s1465 = sadd.s32 %s1463, %s1464
        %s1466 = smul.addr %s1465, 8
        %s1467 = scalar_lea.vmem %s4, %s1466
      $region48: #{basic_conv2d.1} parent=43 // pred_fallthru
        _
    $region44: #{basic_conv2d.1} parent=5 // pred_fallthru
      _
  $region6: #{basic_conv2d.1} parent=0 // loop_footer
    %s14 = sadd.s32 1, %s10
  $region7: #{basic_conv2d.1} parent=0 // loop_footer_branch
    %9 = sbr.rel target = $region3
  $region8: #{basic_conv2d.1} parent=0 // loop_exit
    _

</llo_original>
